<compile_context>
chip_gen: v7x
topology: tpu7x:2x2x1
jax: 0.10.0
libtpu: 0.0.40
codegen_flags: <defaults>
</compile_context>

<pallas_src>
import jax
import jax.numpy as jnp
from jax.experimental import pallas as pl
from jax.experimental.pallas import tpu as pltpu


def _bcast_mul_kernel(scale_ref, x_ref, o_ref):
    # scale_ref: (TM, 1); x_ref / o_ref: (TM, TN).  Pure VPU broadcast-mul,
    # with an optional dtype cast fused into the store.
    o_ref[...] = (x_ref[...] * scale_ref[...]).astype(o_ref.dtype)


def _round_up(x, m):
    return ((x + m - 1) // m) * m


def _chip_info():
    """Return (scoped_vmem_budget_bytes, use_core_parallel) per generation."""
    try:
        kind = jax.devices()[0].device_kind.lower()
    except Exception:
        kind = ""
    if "v7" in kind:
        scoped = 32 << 20       # 32 MiB scoped default (64 MiB is physical)
        core_parallel = True    # 2 TensorCores per chip
    elif "v6" in kind:
        scoped = 32 << 20
        core_parallel = False
    elif "v5" in kind:
        scoped = 16 << 20       # v5e scoped-VMEM default
        core_parallel = False
    else:
        scoped = 16 << 20       # conservative for unknown chips
        core_parallel = False
    # Headroom for the scale blocks, semaphores and compiler scratch.
    return int(scoped * 0.6), core_parallel


def _choose_tiling(nc, hw, itemsize, budget_bytes):
    """Pick (tm, tn) block shape for the (nc, hw) slab.

    Double-buffered x-input + output blocks dominate VMEM:
        working set ~= 4 * tm * tn * itemsize.
    """
    bytes_per_full_width_row = 4 * hw * itemsize
    if 8 * bytes_per_full_width_row <= budget_bytes:
        # 1-D tiling over rows; keep the full (unpadded) lane extent.
        if nc <= 8:
            return nc, hw
        rows_cap = max(8, (budget_bytes // bytes_per_full_width_row // 8) * 8)
        # Largest tile that still yields >= 2 grid steps (DMA/compute overlap).
        two_step_rows = _round_up(pl.cdiv(nc, 2), 8)
        tm = max(8, min(rows_cap, two_step_rows))
        return tm, hw
    # Fallback for very large H*W: also split the lane axis into 128-multiple
    # blocks so the working set stays bounded (instead of 8 rows of unbounded
    # width).
    tm = min(8, nc)
    lanes_cap = budget_bytes // (4 * max(tm, 1) * itemsize)
    tn = max(128, (lanes_cap // 128) * 128)
    if tn >= hw:
        tn = hw
    return tm, tn


def broadcast_channel_mul(x78, x73, *, donate_x=False, out_dtype=None):
    """operator.mul(x78, x73): x78 (N, C, 1, 1) * x73 (N, C, H, W)."""
    N, C, H, W = x73.shape
    assert x78.shape == (N, C, 1, 1)
    out_dtype = jnp.dtype(out_dtype) if out_dtype is not None else jnp.dtype(x73.dtype)

    NC, HW = N * C, H * W
    x2d = x73.reshape(NC, HW)                      # (NC, HW) activations
    s2d = x78.reshape(NC, 1).astype(x73.dtype)     # (NC, 1) per-channel scale

    budget, core_parallel = _chip_info()
    itemsize = max(jnp.dtype(x73.dtype).itemsize, out_dtype.itemsize)
    tm, tn = _choose_tiling(NC, HW, itemsize, budget)

    grid = (pl.cdiv(NC, tm), pl.cdiv(HW, tn))
    if core_parallel and grid[0] > 1:
        # Real two-TensorCore split on v7x (plain "parallel" barely changes
        # codegen); each TC streams half of the rows.
        dim_sem = (pltpu.CORE_PARALLEL, pltpu.PARALLEL)
    else:
        dim_sem = ("parallel", "parallel")

    # Reuse x73's HBM buffer for the output when the caller says it is dead.
    aliases = {}
    if donate_x and out_dtype == jnp.dtype(x73.dtype):
        aliases = {1: 0}   # inputs: s2d=0, x2d=1 -> output 0

    out2d = pl.pallas_call(
        _bcast_mul_kernel,
        out_shape=jax.ShapeDtypeStruct((NC, HW), out_dtype),
        grid=grid,
        in_specs=[
            pl.BlockSpec((tm, 1), lambda i, j: (i, 0)),    # per-channel scale
            pl.BlockSpec((tm, tn), lambda i, j: (i, j)),   # activations
        ],
        out_specs=pl.BlockSpec((tm, tn), lambda i, j: (i, j)),
        compiler_params=pltpu.CompilerParams(dimension_semantics=dim_sem),
        input_output_aliases=aliases,
    )(s2d, x2d)

    return out2d.reshape(N, C, H, W)


if __name__ == "__main__":
    # Shapes from the reference module: (1, 288, 1, 1) * (1, 288, 56, 56)
    # (~3.6 MiB of activations -> already small).
    N, C, H, W = 1, 288, 56, 56
    key = jax.random.PRNGKey(0)
    k1, k2 = jax.random.split(key)
    x73 = jax.random.normal(k1, (N, C, H, W), dtype=jnp.float32)
    x78 = jax.random.normal(k2, (N, C, 1, 1), dtype=jnp.float32)

    out = broadcast_channel_mul(x78, x73)
    out = jax.block_until_ready(out)

    # Correctness check against plain JAX broadcasting.
    ref = x78 * x73
    assert out.shape == ref.shape
    assert jnp.allclose(out, ref, atol=1e-6, rtol=1e-6)

    print("KERNEL_OK")
</pallas_src>

<mosaic_0001>
module attributes {stable_mosaic.version = 11 : i64} {
  func.func @_bcast_mul_kernel(%arg0: i32, %arg1: i32, %arg2: memref<144x1xf32, #tpu.memory_space<vmem>>, %arg3: memref<144x3136xf32, #tpu.memory_space<vmem>>, %arg4: memref<144x3136xf32, #tpu.memory_space<vmem>>) attributes {dimension_semantics = [#tpu.dimension_semantics<parallel>, #tpu.dimension_semantics<parallel>], iteration_bounds = array<i64: 2, 1>, scalar_prefetch = 0 : i64, scratch_operands = 0 : i64, tpu.core_type = #tpu.core_type<tc>, window_params = [{transform_indices = @transform_0, window_bounds = array<i64: 144, 1>}, {transform_indices = @transform_1, window_bounds = array<i64: 144, 3136>}, {transform_indices = @transform_2, window_bounds = array<i64: 144, 3136>}]} {
    %c0 = arith.constant 0 : index
    %c0_0 = arith.constant 0 : index
    %0 = vector.load %arg3[%c0, %c0_0] : memref<144x3136xf32, #tpu.memory_space<vmem>>, vector<144x3136xf32>
    %c0_1 = arith.constant 0 : index
    %c0_2 = arith.constant 0 : index
    %1 = vector.load %arg2[%c0_1, %c0_2] : memref<144x1xf32, #tpu.memory_space<vmem>>, vector<144x1xf32>
    %2 = vector.broadcast %1 : vector<144x1xf32> to vector<144x3136xf32>
    %3 = arith.mulf %0, %2 : vector<144x3136xf32>
    %c0_3 = arith.constant 0 : index
    %c0_4 = arith.constant 0 : index
    %4 = vector.load %arg4[%c0_3, %c0_4] : memref<144x3136xf32, #tpu.memory_space<vmem>>, vector<144x3136xf32>
    tpu.vector_store %arg4[%c0_3, %c0_4], %3 {strides = array<i32>} : memref<144x3136xf32, #tpu.memory_space<vmem>>, vector<144x3136xf32>,
    return
  }
  func.func @transform_0(%arg0: i32, %arg1: i32) -> (i32, i32) {
    %c0_i32 = arith.constant 0 : i32
    %c0_i32_0 = arith.constant 0 : i32
    return %arg0, %c0_i32 : i32, i32
  }
  func.func @transform_1(%arg0: i32, %arg1: i32) -> (i32, i32) {
    %c0_i32 = arith.constant 0 : i32
    return %arg0, %arg1 : i32, i32
  }
  func.func @transform_2(%arg0: i32, %arg1: i32) -> (i32, i32) {
    %c0_i32 = arith.constant 0 : i32
    return %arg0, %arg1 : i32, i32
  }
}

</mosaic_0001>

<llo_original>
// kernel: tpu_custom_call.1
$region0: #{tpu_custom_call.1}
  #allocation0 [shape = 'u32[]', space=smem, size = 0x4, offset = 0x4, fixed_abs, tag = 'smem constant byte address 0x4 - core index']
  #allocation1 [shape = 'u32[144,128]{1,0:T(1,128)}', space=vmem, size = 0x12000, scoped, tag = 'internal scratch']
  %s0 = inlined_call_operand.vmem [shape: f32[288,1], index: 0, kind: input, shape index: {}]
  %s1 = inlined_call_operand.hbm [shape: f32[288,3136], index: 1, kind: input, shape index: {}]
  %s2 = inlined_call_operand.hbm [shape: f32[288,3136], index: 2, kind: output, shape index: {}]
  %s3 = sld [smem:[#allocation0]]
  $region45: #{tpu_custom_call.1} parent=0
    _
  %s5 = ssub.s32 1, %s3
  %s6 = scalar_select 0, %s5, %s3
  $region1: #{tpu_custom_call.1} parent=0
    #allocation2 [shape = 'u8[3686400]{0}', space=vmem, size = 0x384000, scoped, tag = 'input window, operand 1']
    #allocation3 [shape = 's32[2]{0}', space=sflag, size = 0x8, scoped, tag = 'scoped memory for tpu_custom_call.1']
    #allocation4 [shape = 's32[2]{0}', space=sflag, size = 0x8, scoped, tag = 'scoped memory for tpu_custom_call.1']
    #allocation5 [shape = 'u8[3686400]{0}', space=vmem, size = 0x384000, scoped, tag = 'output window, operand 0']
    %7 = vsyncpa [#allocation3], 0
    %s8 = scalar_lea.sflag [#allocation3], 1
    %9 = vsyncpa %s8, 0
    %10 = vsyncpa [#allocation4], 0
    %s11 = scalar_lea.sflag [#allocation4], 1
    %12 = vsyncpa %s11, 0
    loop: start=0, step=1, limit=4
    $region2: #{tpu_custom_call.1} parent=1 // loop_pre_header
      _
    $region3: #{tpu_custom_call.1} parent=1 // loop_header
      %s14 = sphi 0, %s18
      %p15 = scmp.ge.s32.totalorder %s14, 4
      %s21 = sphi 0, %s33
      %s22 = sphi 0, %s29
      %s23 = sphi 0, %s21
      %s24 = sphi 0, %s22
      %s25 = sphi 0, %s23
      %s26 = sphi 0, %s24
      %s36 = sphi 0, %s38
      %s39 = sphi 0, %s36
      %s40 = sphi 0, %s39
      %s56 = sphi 0, %s40
      %s64 = sphi 0, %s66
      %s67 = sphi 0, %s64
      %s68 = sphi 0, %s67
      %s84 = sphi 0, %s68
      %s92 = sphi 0, %s94
      %s95 = sphi 0, %s92
      %s96 = sphi 0, %s95
      %s112 = sphi 0, %s96
    $region4: #{tpu_custom_call.1} parent=1 // loop_header_branch
      %17 = sbr.rel (%p15) target = $region8
    $region5: #{tpu_custom_call.1} parent=1 // loop_body
      %s19 = ssub.s32 %s14, 1
      %s20 = ssub.s32 %s14, 2
      %s27 = sadd.s32 1, %s22
      %p28 = scmp.ge.s32.totalorder %s27, 1
      %s29 = scalar_select %p28, 0, %s27
      %s30 = sadd.s32 1, %s21
      %s31 = scalar_select %p28, %s30, %s21
      %p32 = scmp.ge.s32.totalorder %s31, 2
      %s33 = scalar_select %p32, 0, %s31
      %s34 = ssub.s32 %s21, %s33
      %p35 = scmp.eq.s32.totalorder %s34, 0
      %s37 = sadd.s32 %s36, 1
      %s38 = scalar_select %p35, %s36, %s37
      %p41 = pneg %p35
      %p42 = scmp.eq.s32.totalorder %s14, 1
      %p43 = por %p41, %p42
      %p44 = scmp.ne.s32.totalorder %s36, %s39
      %p45 = scmp.eq.s32.totalorder %s14, 0
      %p46 = por %p44, %p45
      %p47 = scmp.ne.s32.totalorder %s36, %s39
      %p48 = scmp.eq.s32.totalorder %s19, 1
      %p49 = por %p47, %p48
      %p50 = scmp.ne.s32.totalorder %s39, %s40
      %p51 = scmp.eq.s32.totalorder %s19, 0
      %p52 = por %p50, %p51
      %p53 = scmp.ne.s32.totalorder %s39, %s40
      %p54 = scmp.eq.s32.totalorder %s20, 1
      %p55 = por %p53, %p54
      %p57 = scmp.ne.s32.totalorder %s40, %s56
      %p58 = scmp.eq.s32.totalorder %s20, 0
      %p59 = por %p57, %p58
      %s60 = ssub.s32 %s21, %s33
      %s61 = ssub.s32 %s22, %s29
      %s62 = sor.u32 %s60, %s61
      %p63 = scmp.eq.s32.totalorder %s62, 0
      %s65 = sadd.s32 %s64, 1
      %s66 = scalar_select %p63, %s64, %s65
      %p69 = pneg %p63
      %p70 = scmp.eq.s32.totalorder %s14, 1
      %p71 = por %p69, %p70
      %p72 = scmp.ne.s32.totalorder %s64, %s67
      %p73 = scmp.eq.s32.totalorder %s14, 0
      %p74 = por %p72, %p73
      %p75 = scmp.ne.s32.totalorder %s64, %s67
      %p76 = scmp.eq.s32.totalorder %s19, 1
      %p77 = por %p75, %p76
      %p78 = scmp.ne.s32.totalorder %s67, %s68
      %p79 = scmp.eq.s32.totalorder %s19, 0
      %p80 = por %p78, %p79
      %p81 = scmp.ne.s32.totalorder %s67, %s68
      %p82 = scmp.eq.s32.totalorder %s20, 1
      %p83 = por %p81, %p82
      %p85 = scmp.ne.s32.totalorder %s68, %s84
      %p86 = scmp.eq.s32.totalorder %s20, 0
      %p87 = por %p85, %p86
      %s88 = ssub.s32 %s21, %s33
      %s89 = ssub.s32 %s22, %s29
      %s90 = sor.u32 %s88, %s89
      %p91 = scmp.eq.s32.totalorder %s90, 0
      %s93 = sadd.s32 %s92, 1
      %s94 = scalar_select %p91, %s92, %s93
      %p97 = pneg %p91
      %p98 = scmp.eq.s32.totalorder %s14, 1
      %p99 = por %p97, %p98
      %p100 = scmp.ne.s32.totalorder %s92, %s95
      %p101 = scmp.eq.s32.totalorder %s14, 0
      %p102 = por %p100, %p101
      %p103 = scmp.ne.s32.totalorder %s92, %s95
      %p104 = scmp.eq.s32.totalorder %s19, 1
      %p105 = por %p103, %p104
      %p106 = scmp.ne.s32.totalorder %s95, %s96
      %p107 = scmp.eq.s32.totalorder %s19, 0
      %p108 = por %p106, %p107
      %p109 = scmp.ne.s32.totalorder %s95, %s96
      %p110 = scmp.eq.s32.totalorder %s20, 1
      %p111 = por %p109, %p110
      %p113 = scmp.ne.s32.totalorder %s96, %s112
      %p114 = scmp.eq.s32.totalorder %s20, 0
      %p115 = por %p113, %p114
      %p116 = scmp.le.s32.totalorder 1, %s14
      %p117 = scmp.lt.s32.totalorder %s14, 3
      %p118 = pnand %p116, %p117
      %p119 = pneg %p118
      // Predicated region
      $region9: #{tpu_custom_call.1} parent=5 // pred_check
        _
      $region10: #{tpu_custom_call.1} parent=5 // pred_check_branch
        %121 = sbr.rel (%p118) target = $region12
      $region11: #{tpu_custom_call.1} parent=5 // pred_region
        %s122 = ssub.s32 %s14, 1
      $region12: #{tpu_custom_call.1} parent=5 // pred_fallthru
        _
      %p123 = scmp.lt.s32.totalorder %s14, 2
      // Predicated region
      $region13: #{tpu_custom_call.1} parent=5 // pred_check
        %p124 = pneg %p123
      $region14: #{tpu_custom_call.1} parent=5 // pred_check_branch
        %126 = sbr.rel (%p124) target = $region16
      $region15: #{tpu_custom_call.1} parent=5 // pred_region
        // Predicated region
        $region17: #{tpu_custom_call.1} parent=15 // pred_check
          %p127 = pneg %p46
        $region18: #{tpu_custom_call.1} parent=15 // pred_check_branch
          %129 = sbr.rel (%p127) target = $region20
        $region19: #{tpu_custom_call.1} parent=15 // pred_region
          %s130 = smul.u32 18, %s21
          %p131 = scmp.lt.s32.totalorder %s130, 35
          %s132 = scalar_select %p131, %s130, 35
          %s133 = smul.addr %s132, 8
          %s134 = scalar_lea.vmem %s0, %s133
          %s135 = smul.u32 18, %s21
        $region20: #{tpu_custom_call.1} parent=15 // pred_fallthru
          _
        // Predicated region
        $region21: #{tpu_custom_call.1} parent=15 // pred_check
          %p136 = pneg %p74
        $region22: #{tpu_custom_call.1} parent=15 // pred_check_branch
          %138 = sbr.rel (%p136) target = $region24
        $region23: #{tpu_custom_call.1} parent=15 // pred_region
          %s139 = sand.u32 %s64, 1
          %s140 = scalar_lea.sflag [#allocation3], %s139
          %s141 = sand.u32 %s64, 1
          %s142 = smul.addr %s141, 3600
          %s143 = scalar_lea.vmem [#allocation2], %s142
          %s144 = smul.u32 18, %s21
          %s145 = smul.u32 25, %s22
          %s147 = ssub.s32 57600, 57600
          %148 = vsyncadd %s140, %s147
          %s149 = smul.addr %s144, 25
          %s150 = sadd.s32 %s145, %s149
          %s151 = smul.addr %s150, 128
          %s152 = scalar_lea.hbm %s1, %s151
          %s153 = sshll.u32 %s143, 4
          %s154 = int_to_ptr.vmem [resolvable:$true] %s153
          %159 = dma.hbm_to_vmem [thread:$0]  %s152, 57600, %s154, %s140, 3200, 3200, 200
        $region24: #{tpu_custom_call.1} parent=15 // pred_fallthru
          _
      $region16: #{tpu_custom_call.1} parent=5 // pred_fallthru
        _
      %p160 = scmp.le.s32.totalorder 1, %s14
      %p161 = scmp.lt.s32.totalorder %s14, 3
      %p162 = pnand %p160, %p161
      %p163 = pneg %p162
      // Predicated region
      $region25: #{tpu_custom_call.1} parent=5 // pred_check
        _
      $region26: #{tpu_custom_call.1} parent=5 // pred_check_branch
        %165 = sbr.rel (%p162) target = $region28
      $region27: #{tpu_custom_call.1} parent=5 // pred_region
        %s166 = ssub.s32 %s14, 1
        %s167 = sand.u32 %s67, 1
        %s168 = scalar_lea.sflag [#allocation3], %s167
        %s169 = sand.u32 %s67, 1
        %s170 = smul.addr %s169, 3600
        %s171 = scalar_lea.vmem [#allocation2], %s170
        // Predicated region
        $region29: #{tpu_custom_call.1} parent=27 // pred_check
          %p172 = pneg %p80
        $region30: #{tpu_custom_call.1} parent=27 // pred_check_branch
          %174 = sbr.rel (%p172) target = $region32
        $region31: #{tpu_custom_call.1} parent=27 // pred_region
          %175 = dma.done %s168, 57600
        $region32: #{tpu_custom_call.1} parent=27 // pred_fallthru
          _
        %s176 = smul.u32 18, %s23
        %p177 = scmp.lt.s32.totalorder %s176, 35
        %s178 = scalar_select %p177, %s176, 35
        %s179 = smul.addr %s178, 8
        %s180 = scalar_lea.vmem %s0, %s179
        %p181 = pneg %p52
        %p182 = pneg %p49
        %s183 = sand.u32 %s67, 1
        %s184 = scalar_lea.sflag [#allocation3], %s183
        %s185 = sand.u32 %s67, 1
        %s186 = smul.addr %s185, 3600
        %s187 = scalar_lea.vmem [#allocation2], %s186
        %p188 = pneg %p80
        %p189 = pneg %p77
        %p190 = pneg %p108
        %p191 = pneg %p105
        %s192 = sand.u32 %s95, 1
        %s193 = scalar_lea.sflag [#allocation4], %s192
        %s194 = sand.u32 %s95, 1
        %s195 = smul.addr %s194, 3600
        %s196 = scalar_lea.vmem [#allocation5], %s195
        %s197 = smul.u32 18, %s23
        %p198 = scmp.lt.s32.totalorder %s197, 35
        %s199 = scalar_select %p198, %s197, 35
        %s200 = smul.addr %s199, 8
        %s201 = scalar_lea.vmem %s0, %s200
        %s202 = smul.u32 18, %s23
        %s203 = smul.u32 18, %s23
        %s204 = smul.u32 25, %s24
        %s205 = smul.u32 18, %s23
        %s206 = smul.u32 25, %s24
        %v207 = vld [vmem:[%s171] sm:$0xff]
        %v208 = vld [vmem:[%s171 + $0x8] sm:$0xff]
        %v209 = vld [vmem:[%s171 + $0x10] sm:$0xff]
        %v210 = vld [vmem:[%s171 + $0x18] sm:$0xff]
        %v211 = vld [vmem:[%s171 + $0x20] sm:$0xff]
        %v212 = vld [vmem:[%s171 + $0x28] sm:$0xff]
        %v213 = vld [vmem:[%s171 + $0x30] sm:$0xff]
        %v214 = vld [vmem:[%s171 + $0x38] sm:$0xff]
        %v215 = vld [vmem:[%s171 + $0x40] sm:$0xff]
        %v216 = vld [vmem:[%s171 + $0x48] sm:$0xff]
        %v217 = vld [vmem:[%s171 + $0x50] sm:$0xff]
        %v218 = vld [vmem:[%s171 + $0x58] sm:$0xff]
        %v219 = vld [vmem:[%s171 + $0x60] sm:$0xff]
        %v220 = vld [vmem:[%s171 + $0x68] sm:$0xff]
        %v221 = vld [vmem:[%s171 + $0x70] sm:$0xff]
        %v222 = vld [vmem:[%s171 + $0x78] sm:$0xff]
        %v223 = vld [vmem:[%s171 + $0x80] sm:$0xff]
        %v224 = vld [vmem:[%s171 + $0x88] sm:$0xff]
        %v225 = vld [vmem:[%s171 + $0x90] sm:$0xff]
        %v226 = vld [vmem:[%s171 + $0x98] sm:$0xff]
        %v227 = vld [vmem:[%s171 + $0xa0] sm:$0xff]
        %v228 = vld [vmem:[%s171 + $0xa8] sm:$0xff]
        %v229 = vld [vmem:[%s171 + $0xb0] sm:$0xff]
        %v230 = vld [vmem:[%s171 + $0xb8] sm:$0xff]
        %v231 = vld [vmem:[%s171 + $0xc0] sm:$0xff]
        %v232 = vld [vmem:[%s171 + $0xc8] sm:$0xff]
        %v233 = vld [vmem:[%s171 + $0xd0] sm:$0xff]
        %v234 = vld [vmem:[%s171 + $0xd8] sm:$0xff]
        %v235 = vld [vmem:[%s171 + $0xe0] sm:$0xff]
        %v236 = vld [vmem:[%s171 + $0xe8] sm:$0xff]
        %v237 = vld [vmem:[%s171 + $0xf0] sm:$0xff]
        %v238 = vld [vmem:[%s171 + $0xf8] sm:$0xff]
        %v239 = vld [vmem:[%s171 + $0x100] sm:$0xff]
        %v240 = vld [vmem:[%s171 + $0x108] sm:$0xff]
        %v241 = vld [vmem:[%s171 + $0x110] sm:$0xff]
        %v242 = vld [vmem:[%s171 + $0x118] sm:$0xff]
        %v243 = vld [vmem:[%s171 + $0x120] sm:$0xff]
        %v244 = vld [vmem:[%s171 + $0x128] sm:$0xff]
        %v245 = vld [vmem:[%s171 + $0x130] sm:$0xff]
        %v246 = vld [vmem:[%s171 + $0x138] sm:$0xff]
        %v247 = vld [vmem:[%s171 + $0x140] sm:$0xff]
        %v248 = vld [vmem:[%s171 + $0x148] sm:$0xff]
        %v249 = vld [vmem:[%s171 + $0x150] sm:$0xff]
        %v250 = vld [vmem:[%s171 + $0x158] sm:$0xff]
        %v251 = vld [vmem:[%s171 + $0x160] sm:$0xff]
        %v252 = vld [vmem:[%s171 + $0x168] sm:$0xff]
        %v253 = vld [vmem:[%s171 + $0x170] sm:$0xff]
        %v254 = vld [vmem:[%s171 + $0x178] sm:$0xff]
        %v255 = vld [vmem:[%s171 + $0x180] sm:$0xff]
        %v256 = vld [vmem:[%s171 + $0x188] sm:$0xff]
        %v257 = vld [vmem:[%s171 + $0x190] sm:$0xff]
        %v258 = vld [vmem:[%s171 + $0x198] sm:$0xff]
        %v259 = vld [vmem:[%s171 + $0x1a0] sm:$0xff]
        %v260 = vld [vmem:[%s171 + $0x1a8] sm:$0xff]
        %v261 = vld [vmem:[%s171 + $0x1b0] sm:$0xff]
        %v262 = vld [vmem:[%s171 + $0x1b8] sm:$0xff]
        %v263 = vld [vmem:[%s171 + $0x1c0] sm:$0xff]
        %v264 = vld [vmem:[%s171 + $0x1c8] sm:$0xff]
        %v265 = vld [vmem:[%s171 + $0x1d0] sm:$0xff]
        %v266 = vld [vmem:[%s171 + $0x1d8] sm:$0xff]
        %v267 = vld [vmem:[%s171 + $0x1e0] sm:$0xff]
        %v268 = vld [vmem:[%s171 + $0x1e8] sm:$0xff]
        %v269 = vld [vmem:[%s171 + $0x1f0] sm:$0xff]
        %v270 = vld [vmem:[%s171 + $0x1f8] sm:$0xff]
        %v271 = vld [vmem:[%s171 + $0x200] sm:$0xff]
        %v272 = vld [vmem:[%s171 + $0x208] sm:$0xff]
        %v273 = vld [vmem:[%s171 + $0x210] sm:$0xff]
        %v274 = vld [vmem:[%s171 + $0x218] sm:$0xff]
        %v275 = vld [vmem:[%s171 + $0x220] sm:$0xff]
        %v276 = vld [vmem:[%s171 + $0x228] sm:$0xff]
        %v277 = vld [vmem:[%s171 + $0x230] sm:$0xff]
        %v278 = vld [vmem:[%s171 + $0x238] sm:$0xff]
        %v279 = vld [vmem:[%s171 + $0x240] sm:$0xff]
        %v280 = vld [vmem:[%s171 + $0x248] sm:$0xff]
        %v281 = vld [vmem:[%s171 + $0x250] sm:$0xff]
        %v282 = vld [vmem:[%s171 + $0x258] sm:$0xff]
        %v283 = vld [vmem:[%s171 + $0x260] sm:$0xff]
        %v284 = vld [vmem:[%s171 + $0x268] sm:$0xff]
        %v285 = vld [vmem:[%s171 + $0x270] sm:$0xff]
        %v286 = vld [vmem:[%s171 + $0x278] sm:$0xff]
        %v287 = vld [vmem:[%s171 + $0x280] sm:$0xff]
        %v288 = vld [vmem:[%s171 + $0x288] sm:$0xff]
        %v289 = vld [vmem:[%s171 + $0x290] sm:$0xff]
        %v290 = vld [vmem:[%s171 + $0x298] sm:$0xff]
        %v291 = vld [vmem:[%s171 + $0x2a0] sm:$0xff]
        %v292 = vld [vmem:[%s171 + $0x2a8] sm:$0xff]
        %v293 = vld [vmem:[%s171 + $0x2b0] sm:$0xff]
        %v294 = vld [vmem:[%s171 + $0x2b8] sm:$0xff]
        %v295 = vld [vmem:[%s171 + $0x2c0] sm:$0xff]
        %v296 = vld [vmem:[%s171 + $0x2c8] sm:$0xff]
        %v297 = vld [vmem:[%s171 + $0x2d0] sm:$0xff]
        %v298 = vld [vmem:[%s171 + $0x2d8] sm:$0xff]
        %v299 = vld [vmem:[%s171 + $0x2e0] sm:$0xff]
        %v300 = vld [vmem:[%s171 + $0x2e8] sm:$0xff]
        %v301 = vld [vmem:[%s171 + $0x2f0] sm:$0xff]
        %v302 = vld [vmem:[%s171 + $0x2f8] sm:$0xff]
        %v303 = vld [vmem:[%s171 + $0x300] sm:$0xff]
        %v304 = vld [vmem:[%s171 + $0x308] sm:$0xff]
        %v305 = vld [vmem:[%s171 + $0x310] sm:$0xff]
        %v306 = vld [vmem:[%s171 + $0x318] sm:$0xff]
        %v307 = vld [vmem:[%s171 + $0x320] sm:$0xff]
        %v308 = vld [vmem:[%s171 + $0x328] sm:$0xff]
        %v309 = vld [vmem:[%s171 + $0x330] sm:$0xff]
        %v310 = vld [vmem:[%s171 + $0x338] sm:$0xff]
        %v311 = vld [vmem:[%s171 + $0x340] sm:$0xff]
        %v312 = vld [vmem:[%s171 + $0x348] sm:$0xff]
        %v313 = vld [vmem:[%s171 + $0x350] sm:$0xff]
        %v314 = vld [vmem:[%s171 + $0x358] sm:$0xff]
        %v315 = vld [vmem:[%s171 + $0x360] sm:$0xff]
        %v316 = vld [vmem:[%s171 + $0x368] sm:$0xff]
        %v317 = vld [vmem:[%s171 + $0x370] sm:$0xff]
        %v318 = vld [vmem:[%s171 + $0x378] sm:$0xff]
        %v319 = vld [vmem:[%s171 + $0x380] sm:$0xff]
        %v320 = vld [vmem:[%s171 + $0x388] sm:$0xff]
        %v321 = vld [vmem:[%s171 + $0x390] sm:$0xff]
        %v322 = vld [vmem:[%s171 + $0x398] sm:$0xff]
        %v323 = vld [vmem:[%s171 + $0x3a0] sm:$0xff]
        %v324 = vld [vmem:[%s171 + $0x3a8] sm:$0xff]
        %v325 = vld [vmem:[%s171 + $0x3b0] sm:$0xff]
        %v326 = vld [vmem:[%s171 + $0x3b8] sm:$0xff]
        %v327 = vld [vmem:[%s171 + $0x3c0] sm:$0xff]
        %v328 = vld [vmem:[%s171 + $0x3c8] sm:$0xff]
        %v329 = vld [vmem:[%s171 + $0x3d0] sm:$0xff]
        %v330 = vld [vmem:[%s171 + $0x3d8] sm:$0xff]
        %v331 = vld [vmem:[%s171 + $0x3e0] sm:$0xff]
        %v332 = vld [vmem:[%s171 + $0x3e8] sm:$0xff]
        %v333 = vld [vmem:[%s171 + $0x3f0] sm:$0xff]
        %v334 = vld [vmem:[%s171 + $0x3f8] sm:$0xff]
        %v335 = vld [vmem:[%s171 + $0x400] sm:$0xff]
        %v336 = vld [vmem:[%s171 + $0x408] sm:$0xff]
        %v337 = vld [vmem:[%s171 + $0x410] sm:$0xff]
        %v338 = vld [vmem:[%s171 + $0x418] sm:$0xff]
        %v339 = vld [vmem:[%s171 + $0x420] sm:$0xff]
        %v340 = vld [vmem:[%s171 + $0x428] sm:$0xff]
        %v341 = vld [vmem:[%s171 + $0x430] sm:$0xff]
        %v342 = vld [vmem:[%s171 + $0x438] sm:$0xff]
        %v343 = vld [vmem:[%s171 + $0x440] sm:$0xff]
        %v344 = vld [vmem:[%s171 + $0x448] sm:$0xff]
        %v345 = vld [vmem:[%s171 + $0x450] sm:$0xff]
        %v346 = vld [vmem:[%s171 + $0x458] sm:$0xff]
        %v347 = vld [vmem:[%s171 + $0x460] sm:$0xff]
        %v348 = vld [vmem:[%s171 + $0x468] sm:$0xff]
        %v349 = vld [vmem:[%s171 + $0x470] sm:$0xff]
        %v350 = vld [vmem:[%s171 + $0x478] sm:$0xff]
        %v351 = vld [vmem:[%s171 + $0x480] sm:$0xff]
        %v352 = vld [vmem:[%s171 + $0x488] sm:$0xff]
        %v353 = vld [vmem:[%s171 + $0x490] sm:$0xff]
        %v354 = vld [vmem:[%s171 + $0x498] sm:$0xff]
        %v355 = vld [vmem:[%s171 + $0x4a0] sm:$0xff]
        %v356 = vld [vmem:[%s171 + $0x4a8] sm:$0xff]
        %v357 = vld [vmem:[%s171 + $0x4b0] sm:$0xff]
        %v358 = vld [vmem:[%s171 + $0x4b8] sm:$0xff]
        %v359 = vld [vmem:[%s171 + $0x4c0] sm:$0xff]
        %v360 = vld [vmem:[%s171 + $0x4c8] sm:$0xff]
        %v361 = vld [vmem:[%s171 + $0x4d0] sm:$0xff]
        %v362 = vld [vmem:[%s171 + $0x4d8] sm:$0xff]
        %v363 = vld [vmem:[%s171 + $0x4e0] sm:$0xff]
        %v364 = vld [vmem:[%s171 + $0x4e8] sm:$0xff]
        %v365 = vld [vmem:[%s171 + $0x4f0] sm:$0xff]
        %v366 = vld [vmem:[%s171 + $0x4f8] sm:$0xff]
        %v367 = vld [vmem:[%s171 + $0x500] sm:$0xff]
        %v368 = vld [vmem:[%s171 + $0x508] sm:$0xff]
        %v369 = vld [vmem:[%s171 + $0x510] sm:$0xff]
        %v370 = vld [vmem:[%s171 + $0x518] sm:$0xff]
        %v371 = vld [vmem:[%s171 + $0x520] sm:$0xff]
        %v372 = vld [vmem:[%s171 + $0x528] sm:$0xff]
        %v373 = vld [vmem:[%s171 + $0x530] sm:$0xff]
        %v374 = vld [vmem:[%s171 + $0x538] sm:$0xff]
        %v375 = vld [vmem:[%s171 + $0x540] sm:$0xff]
        %v376 = vld [vmem:[%s171 + $0x548] sm:$0xff]
        %v377 = vld [vmem:[%s171 + $0x550] sm:$0xff]
        %v378 = vld [vmem:[%s171 + $0x558] sm:$0xff]
        %v379 = vld [vmem:[%s171 + $0x560] sm:$0xff]
        %v380 = vld [vmem:[%s171 + $0x568] sm:$0xff]
        %v381 = vld [vmem:[%s171 + $0x570] sm:$0xff]
        %v382 = vld [vmem:[%s171 + $0x578] sm:$0xff]
        %v383 = vld [vmem:[%s171 + $0x580] sm:$0xff]
        %v384 = vld [vmem:[%s171 + $0x588] sm:$0xff]
        %v385 = vld [vmem:[%s171 + $0x590] sm:$0xff]
        %v386 = vld [vmem:[%s171 + $0x598] sm:$0xff]
        %v387 = vld [vmem:[%s171 + $0x5a0] sm:$0xff]
        %v388 = vld [vmem:[%s171 + $0x5a8] sm:$0xff]
        %v389 = vld [vmem:[%s171 + $0x5b0] sm:$0xff]
        %v390 = vld [vmem:[%s171 + $0x5b8] sm:$0xff]
        %v391 = vld [vmem:[%s171 + $0x5c0] sm:$0xff]
        %v392 = vld [vmem:[%s171 + $0x5c8] sm:$0xff]
        %v393 = vld [vmem:[%s171 + $0x5d0] sm:$0xff]
        %v394 = vld [vmem:[%s171 + $0x5d8] sm:$0xff]
        %v395 = vld [vmem:[%s171 + $0x5e0] sm:$0xff]
        %v396 = vld [vmem:[%s171 + $0x5e8] sm:$0xff]
        %v397 = vld [vmem:[%s171 + $0x5f0] sm:$0xff]
        %v398 = vld [vmem:[%s171 + $0x5f8] sm:$0xff]
        %v399 = vld [vmem:[%s171 + $0x600] sm:$0xff]
        %v400 = vld [vmem:[%s171 + $0x608] sm:$0xff]
        %v401 = vld [vmem:[%s171 + $0x610] sm:$0xff]
        %v402 = vld [vmem:[%s171 + $0x618] sm:$0xff]
        %v403 = vld [vmem:[%s171 + $0x620] sm:$0xff]
        %v404 = vld [vmem:[%s171 + $0x628] sm:$0xff]
        %v405 = vld [vmem:[%s171 + $0x630] sm:$0xff]
        %v406 = vld [vmem:[%s171 + $0x638] sm:$0xff]
        %v407 = vld [vmem:[%s171 + $0x640] sm:$0xff]
        %v408 = vld [vmem:[%s171 + $0x648] sm:$0xff]
        %v409 = vld [vmem:[%s171 + $0x650] sm:$0xff]
        %v410 = vld [vmem:[%s171 + $0x658] sm:$0xff]
        %v411 = vld [vmem:[%s171 + $0x660] sm:$0xff]
        %v412 = vld [vmem:[%s171 + $0x668] sm:$0xff]
        %v413 = vld [vmem:[%s171 + $0x670] sm:$0xff]
        %v414 = vld [vmem:[%s171 + $0x678] sm:$0xff]
        %v415 = vld [vmem:[%s171 + $0x680] sm:$0xff]
        %v416 = vld [vmem:[%s171 + $0x688] sm:$0xff]
        %v417 = vld [vmem:[%s171 + $0x690] sm:$0xff]
        %v418 = vld [vmem:[%s171 + $0x698] sm:$0xff]
        %v419 = vld [vmem:[%s171 + $0x6a0] sm:$0xff]
        %v420 = vld [vmem:[%s171 + $0x6a8] sm:$0xff]
        %v421 = vld [vmem:[%s171 + $0x6b0] sm:$0xff]
        %v422 = vld [vmem:[%s171 + $0x6b8] sm:$0xff]
        %v423 = vld [vmem:[%s171 + $0x6c0] sm:$0xff]
        %v424 = vld [vmem:[%s171 + $0x6c8] sm:$0xff]
        %v425 = vld [vmem:[%s171 + $0x6d0] sm:$0xff]
        %v426 = vld [vmem:[%s171 + $0x6d8] sm:$0xff]
        %v427 = vld [vmem:[%s171 + $0x6e0] sm:$0xff]
        %v428 = vld [vmem:[%s171 + $0x6e8] sm:$0xff]
        %v429 = vld [vmem:[%s171 + $0x6f0] sm:$0xff]
        %v430 = vld [vmem:[%s171 + $0x6f8] sm:$0xff]
        %v431 = vld [vmem:[%s171 + $0x700] sm:$0xff]
        %v432 = vld [vmem:[%s171 + $0x708] sm:$0xff]
        %v433 = vld [vmem:[%s171 + $0x710] sm:$0xff]
        %v434 = vld [vmem:[%s171 + $0x718] sm:$0xff]
        %v435 = vld [vmem:[%s171 + $0x720] sm:$0xff]
        %v436 = vld [vmem:[%s171 + $0x728] sm:$0xff]
        %v437 = vld [vmem:[%s171 + $0x730] sm:$0xff]
        %v438 = vld [vmem:[%s171 + $0x738] sm:$0xff]
        %v439 = vld [vmem:[%s171 + $0x740] sm:$0xff]
        %v440 = vld [vmem:[%s171 + $0x748] sm:$0xff]
        %v441 = vld [vmem:[%s171 + $0x750] sm:$0xff]
        %v442 = vld [vmem:[%s171 + $0x758] sm:$0xff]
        %v443 = vld [vmem:[%s171 + $0x760] sm:$0xff]
        %v444 = vld [vmem:[%s171 + $0x768] sm:$0xff]
        %v445 = vld [vmem:[%s171 + $0x770] sm:$0xff]
        %v446 = vld [vmem:[%s171 + $0x778] sm:$0xff]
        %v447 = vld [vmem:[%s171 + $0x780] sm:$0xff]
        %v448 = vld [vmem:[%s171 + $0x788] sm:$0xff]
        %v449 = vld [vmem:[%s171 + $0x790] sm:$0xff]
        %v450 = vld [vmem:[%s171 + $0x798] sm:$0xff]
        %v451 = vld [vmem:[%s171 + $0x7a0] sm:$0xff]
        %v452 = vld [vmem:[%s171 + $0x7a8] sm:$0xff]
        %v453 = vld [vmem:[%s171 + $0x7b0] sm:$0xff]
        %v454 = vld [vmem:[%s171 + $0x7b8] sm:$0xff]
        %v455 = vld [vmem:[%s171 + $0x7c0] sm:$0xff]
        %v456 = vld [vmem:[%s171 + $0x7c8] sm:$0xff]
        %v457 = vld [vmem:[%s171 + $0x7d0] sm:$0xff]
        %v458 = vld [vmem:[%s171 + $0x7d8] sm:$0xff]
        %v459 = vld [vmem:[%s171 + $0x7e0] sm:$0xff]
        %v460 = vld [vmem:[%s171 + $0x7e8] sm:$0xff]
        %v461 = vld [vmem:[%s171 + $0x7f0] sm:$0xff]
        %v462 = vld [vmem:[%s171 + $0x7f8] sm:$0xff]
        %v463 = vld [vmem:[%s171 + $0x800] sm:$0xff]
        %v464 = vld [vmem:[%s171 + $0x808] sm:$0xff]
        %v465 = vld [vmem:[%s171 + $0x810] sm:$0xff]
        %v466 = vld [vmem:[%s171 + $0x818] sm:$0xff]
        %v467 = vld [vmem:[%s171 + $0x820] sm:$0xff]
        %v468 = vld [vmem:[%s171 + $0x828] sm:$0xff]
        %v469 = vld [vmem:[%s171 + $0x830] sm:$0xff]
        %v470 = vld [vmem:[%s171 + $0x838] sm:$0xff]
        %v471 = vld [vmem:[%s171 + $0x840] sm:$0xff]
        %v472 = vld [vmem:[%s171 + $0x848] sm:$0xff]
        %v473 = vld [vmem:[%s171 + $0x850] sm:$0xff]
        %v474 = vld [vmem:[%s171 + $0x858] sm:$0xff]
        %v475 = vld [vmem:[%s171 + $0x860] sm:$0xff]
        %v476 = vld [vmem:[%s171 + $0x868] sm:$0xff]
        %v477 = vld [vmem:[%s171 + $0x870] sm:$0xff]
        %v478 = vld [vmem:[%s171 + $0x878] sm:$0xff]
        %v479 = vld [vmem:[%s171 + $0x880] sm:$0xff]
        %v480 = vld [vmem:[%s171 + $0x888] sm:$0xff]
        %v481 = vld [vmem:[%s171 + $0x890] sm:$0xff]
        %v482 = vld [vmem:[%s171 + $0x898] sm:$0xff]
        %v483 = vld [vmem:[%s171 + $0x8a0] sm:$0xff]
        %v484 = vld [vmem:[%s171 + $0x8a8] sm:$0xff]
        %v485 = vld [vmem:[%s171 + $0x8b0] sm:$0xff]
        %v486 = vld [vmem:[%s171 + $0x8b8] sm:$0xff]
        %v487 = vld [vmem:[%s171 + $0x8c0] sm:$0xff]
        %v488 = vld [vmem:[%s171 + $0x8c8] sm:$0xff]
        %v489 = vld [vmem:[%s171 + $0x8d0] sm:$0xff]
        %v490 = vld [vmem:[%s171 + $0x8d8] sm:$0xff]
        %v491 = vld [vmem:[%s171 + $0x8e0] sm:$0xff]
        %v492 = vld [vmem:[%s171 + $0x8e8] sm:$0xff]
        %v493 = vld [vmem:[%s171 + $0x8f0] sm:$0xff]
        %v494 = vld [vmem:[%s171 + $0x8f8] sm:$0xff]
        %v495 = vld [vmem:[%s171 + $0x900] sm:$0xff]
        %v496 = vld [vmem:[%s171 + $0x908] sm:$0xff]
        %v497 = vld [vmem:[%s171 + $0x910] sm:$0xff]
        %v498 = vld [vmem:[%s171 + $0x918] sm:$0xff]
        %v499 = vld [vmem:[%s171 + $0x920] sm:$0xff]
        %v500 = vld [vmem:[%s171 + $0x928] sm:$0xff]
        %v501 = vld [vmem:[%s171 + $0x930] sm:$0xff]
        %v502 = vld [vmem:[%s171 + $0x938] sm:$0xff]
        %v503 = vld [vmem:[%s171 + $0x940] sm:$0xff]
        %v504 = vld [vmem:[%s171 + $0x948] sm:$0xff]
        %v505 = vld [vmem:[%s171 + $0x950] sm:$0xff]
        %v506 = vld [vmem:[%s171 + $0x958] sm:$0xff]
        %v507 = vld [vmem:[%s171 + $0x960] sm:$0xff]
        %v508 = vld [vmem:[%s171 + $0x968] sm:$0xff]
        %v509 = vld [vmem:[%s171 + $0x970] sm:$0xff]
        %v510 = vld [vmem:[%s171 + $0x978] sm:$0xff]
        %v511 = vld [vmem:[%s171 + $0x980] sm:$0xff]
        %v512 = vld [vmem:[%s171 + $0x988] sm:$0xff]
        %v513 = vld [vmem:[%s171 + $0x990] sm:$0xff]
        %v514 = vld [vmem:[%s171 + $0x998] sm:$0xff]
        %v515 = vld [vmem:[%s171 + $0x9a0] sm:$0xff]
        %v516 = vld [vmem:[%s171 + $0x9a8] sm:$0xff]
        %v517 = vld [vmem:[%s171 + $0x9b0] sm:$0xff]
        %v518 = vld [vmem:[%s171 + $0x9b8] sm:$0xff]
        %v519 = vld [vmem:[%s171 + $0x9c0] sm:$0xff]
        %v520 = vld [vmem:[%s171 + $0x9c8] sm:$0xff]
        %v521 = vld [vmem:[%s171 + $0x9d0] sm:$0xff]
        %v522 = vld [vmem:[%s171 + $0x9d8] sm:$0xff]
        %v523 = vld [vmem:[%s171 + $0x9e0] sm:$0xff]
        %v524 = vld [vmem:[%s171 + $0x9e8] sm:$0xff]
        %v525 = vld [vmem:[%s171 + $0x9f0] sm:$0xff]
        %v526 = vld [vmem:[%s171 + $0x9f8] sm:$0xff]
        %v527 = vld [vmem:[%s171 + $0xa00] sm:$0xff]
        %v528 = vld [vmem:[%s171 + $0xa08] sm:$0xff]
        %v529 = vld [vmem:[%s171 + $0xa10] sm:$0xff]
        %v530 = vld [vmem:[%s171 + $0xa18] sm:$0xff]
        %v531 = vld [vmem:[%s171 + $0xa20] sm:$0xff]
        %v532 = vld [vmem:[%s171 + $0xa28] sm:$0xff]
        %v533 = vld [vmem:[%s171 + $0xa30] sm:$0xff]
        %v534 = vld [vmem:[%s171 + $0xa38] sm:$0xff]
        %v535 = vld [vmem:[%s171 + $0xa40] sm:$0xff]
        %v536 = vld [vmem:[%s171 + $0xa48] sm:$0xff]
        %v537 = vld [vmem:[%s171 + $0xa50] sm:$0xff]
        %v538 = vld [vmem:[%s171 + $0xa58] sm:$0xff]
        %v539 = vld [vmem:[%s171 + $0xa60] sm:$0xff]
        %v540 = vld [vmem:[%s171 + $0xa68] sm:$0xff]
        %v541 = vld [vmem:[%s171 + $0xa70] sm:$0xff]
        %v542 = vld [vmem:[%s171 + $0xa78] sm:$0xff]
        %v543 = vld [vmem:[%s171 + $0xa80] sm:$0xff]
        %v544 = vld [vmem:[%s171 + $0xa88] sm:$0xff]
        %v545 = vld [vmem:[%s171 + $0xa90] sm:$0xff]
        %v546 = vld [vmem:[%s171 + $0xa98] sm:$0xff]
        %v547 = vld [vmem:[%s171 + $0xaa0] sm:$0xff]
        %v548 = vld [vmem:[%s171 + $0xaa8] sm:$0xff]
        %v549 = vld [vmem:[%s171 + $0xab0] sm:$0xff]
        %v550 = vld [vmem:[%s171 + $0xab8] sm:$0xff]
        %v551 = vld [vmem:[%s171 + $0xac0] sm:$0xff]
        %v552 = vld [vmem:[%s171 + $0xac8] sm:$0xff]
        %v553 = vld [vmem:[%s171 + $0xad0] sm:$0xff]
        %v554 = vld [vmem:[%s171 + $0xad8] sm:$0xff]
        %v555 = vld [vmem:[%s171 + $0xae0] sm:$0xff]
        %v556 = vld [vmem:[%s171 + $0xae8] sm:$0xff]
        %v557 = vld [vmem:[%s171 + $0xaf0] sm:$0xff]
        %v558 = vld [vmem:[%s171 + $0xaf8] sm:$0xff]
        %v559 = vld [vmem:[%s171 + $0xb00] sm:$0xff]
        %v560 = vld [vmem:[%s171 + $0xb08] sm:$0xff]
        %v561 = vld [vmem:[%s171 + $0xb10] sm:$0xff]
        %v562 = vld [vmem:[%s171 + $0xb18] sm:$0xff]
        %v563 = vld [vmem:[%s171 + $0xb20] sm:$0xff]
        %v564 = vld [vmem:[%s171 + $0xb28] sm:$0xff]
        %v565 = vld [vmem:[%s171 + $0xb30] sm:$0xff]
        %v566 = vld [vmem:[%s171 + $0xb38] sm:$0xff]
        %v567 = vld [vmem:[%s171 + $0xb40] sm:$0xff]
        %v568 = vld [vmem:[%s171 + $0xb48] sm:$0xff]
        %v569 = vld [vmem:[%s171 + $0xb50] sm:$0xff]
        %v570 = vld [vmem:[%s171 + $0xb58] sm:$0xff]
        %v571 = vld [vmem:[%s171 + $0xb60] sm:$0xff]
        %v572 = vld [vmem:[%s171 + $0xb68] sm:$0xff]
        %v573 = vld [vmem:[%s171 + $0xb70] sm:$0xff]
        %v574 = vld [vmem:[%s171 + $0xb78] sm:$0xff]
        %v575 = vld [vmem:[%s171 + $0xb80] sm:$0xff]
        %v576 = vld [vmem:[%s171 + $0xb88] sm:$0xff]
        %v577 = vld [vmem:[%s171 + $0xb90] sm:$0xff]
        %v578 = vld [vmem:[%s171 + $0xb98] sm:$0xff]
        %v579 = vld [vmem:[%s171 + $0xba0] sm:$0xff]
        %v580 = vld [vmem:[%s171 + $0xba8] sm:$0xff]
        %v581 = vld [vmem:[%s171 + $0xbb0] sm:$0xff]
        %v582 = vld [vmem:[%s171 + $0xbb8] sm:$0xff]
        %v583 = vld [vmem:[%s171 + $0xbc0] sm:$0xff]
        %v584 = vld [vmem:[%s171 + $0xbc8] sm:$0xff]
        %v585 = vld [vmem:[%s171 + $0xbd0] sm:$0xff]
        %v586 = vld [vmem:[%s171 + $0xbd8] sm:$0xff]
        %v587 = vld [vmem:[%s171 + $0xbe0] sm:$0xff]
        %v588 = vld [vmem:[%s171 + $0xbe8] sm:$0xff]
        %v589 = vld [vmem:[%s171 + $0xbf0] sm:$0xff]
        %v590 = vld [vmem:[%s171 + $0xbf8] sm:$0xff]
        %v591 = vld [vmem:[%s171 + $0xc00] sm:$0xff]
        %v592 = vld [vmem:[%s171 + $0xc08] sm:$0xff]
        %v593 = vld [vmem:[%s171 + $0xc10] sm:$0xff]
        %v594 = vld [vmem:[%s171 + $0xc18] sm:$0xff]
        %v595 = vld [vmem:[%s171 + $0xc20] sm:$0xff]
        %v596 = vld [vmem:[%s171 + $0xc28] sm:$0xff]
        %v597 = vld [vmem:[%s171 + $0xc30] sm:$0xff]
        %v598 = vld [vmem:[%s171 + $0xc38] sm:$0xff]
        %v599 = vld [vmem:[%s171 + $0xc40] sm:$0xff]
        %v600 = vld [vmem:[%s171 + $0xc48] sm:$0xff]
        %v601 = vld [vmem:[%s171 + $0xc50] sm:$0xff]
        %v602 = vld [vmem:[%s171 + $0xc58] sm:$0xff]
        %v603 = vld [vmem:[%s171 + $0xc60] sm:$0xff]
        %v604 = vld [vmem:[%s171 + $0xc68] sm:$0xff]
        %v605 = vld [vmem:[%s171 + $0xc70] sm:$0xff]
        %v606 = vld [vmem:[%s171 + $0xc78] sm:$0xff]
        %v607 = vld [vmem:[%s171 + $0xc80] sm:$0xff]
        %v608 = vld [vmem:[%s171 + $0xc88] sm:$0xff]
        %v609 = vld [vmem:[%s171 + $0xc90] sm:$0xff]
        %v610 = vld [vmem:[%s171 + $0xc98] sm:$0xff]
        %v611 = vld [vmem:[%s171 + $0xca0] sm:$0xff]
        %v612 = vld [vmem:[%s171 + $0xca8] sm:$0xff]
        %v613 = vld [vmem:[%s171 + $0xcb0] sm:$0xff]
        %v614 = vld [vmem:[%s171 + $0xcb8] sm:$0xff]
        %v615 = vld [vmem:[%s171 + $0xcc0] sm:$0xff]
        %v616 = vld [vmem:[%s171 + $0xcc8] sm:$0xff]
        %v617 = vld [vmem:[%s171 + $0xcd0] sm:$0xff]
        %v618 = vld [vmem:[%s171 + $0xcd8] sm:$0xff]
        %v619 = vld [vmem:[%s171 + $0xce0] sm:$0xff]
        %v620 = vld [vmem:[%s171 + $0xce8] sm:$0xff]
        %v621 = vld [vmem:[%s171 + $0xcf0] sm:$0xff]
        %v622 = vld [vmem:[%s171 + $0xcf8] sm:$0xff]
        %v623 = vld [vmem:[%s171 + $0xd00] sm:$0xff]
        %v624 = vld [vmem:[%s171 + $0xd08] sm:$0xff]
        %v625 = vld [vmem:[%s171 + $0xd10] sm:$0xff]
        %v626 = vld [vmem:[%s171 + $0xd18] sm:$0xff]
        %v627 = vld [vmem:[%s171 + $0xd20] sm:$0xff]
        %v628 = vld [vmem:[%s171 + $0xd28] sm:$0xff]
        %v629 = vld [vmem:[%s171 + $0xd30] sm:$0xff]
        %v630 = vld [vmem:[%s171 + $0xd38] sm:$0xff]
        %v631 = vld [vmem:[%s171 + $0xd40] sm:$0xff]
        %v632 = vld [vmem:[%s171 + $0xd48] sm:$0xff]
        %v633 = vld [vmem:[%s171 + $0xd50] sm:$0xff]
        %v634 = vld [vmem:[%s171 + $0xd58] sm:$0xff]
        %v635 = vld [vmem:[%s171 + $0xd60] sm:$0xff]
        %v636 = vld [vmem:[%s171 + $0xd68] sm:$0xff]
        %v637 = vld [vmem:[%s171 + $0xd70] sm:$0xff]
        %v638 = vld [vmem:[%s171 + $0xd78] sm:$0xff]
        %v639 = vld [vmem:[%s171 + $0xd80] sm:$0xff]
        %v640 = vld [vmem:[%s171 + $0xd88] sm:$0xff]
        %v641 = vld [vmem:[%s171 + $0xd90] sm:$0xff]
        %v642 = vld [vmem:[%s171 + $0xd98] sm:$0xff]
        %v643 = vld [vmem:[%s171 + $0xda0] sm:$0xff]
        %v644 = vld [vmem:[%s171 + $0xda8] sm:$0xff]
        %v645 = vld [vmem:[%s171 + $0xdb0] sm:$0xff]
        %v646 = vld [vmem:[%s171 + $0xdb8] sm:$0xff]
        %v647 = vld [vmem:[%s171 + $0xdc0] sm:$0xff]
        %v648 = vld [vmem:[%s171 + $0xdc8] sm:$0xff]
        %v649 = vld [vmem:[%s171 + $0xdd0] sm:$0xff]
        %v650 = vld [vmem:[%s171 + $0xdd8] sm:$0xff]
        %v651 = vld [vmem:[%s171 + $0xde0] sm:$0xff]
        %v652 = vld [vmem:[%s171 + $0xde8] sm:$0xff]
        %v653 = vld [vmem:[%s171 + $0xdf0] sm:$0xff]
        %v654 = vld [vmem:[%s171 + $0xdf8] sm:$0xff]
        %v655 = vld [vmem:[%s171 + $0xe00] sm:$0xff]
        %v656 = vld [vmem:[%s171 + $0xe08] sm:$0xff]
        %v657 = vld [vmem:[%s201] sm:$0xff]
        %v658 = vld [vmem:[%s201 + $0x8] sm:$0xff]
        %v659 = vld [vmem:[%s201 + $0x10] sm:$0xff]
        %v660 = vld [vmem:[%s201 + $0x18] sm:$0xff]
        %v661 = vld [vmem:[%s201 + $0x20] sm:$0xff]
        %v662 = vld [vmem:[%s201 + $0x28] sm:$0xff]
        %v663 = vld [vmem:[%s201 + $0x30] sm:$0xff]
        %v664 = vld [vmem:[%s201 + $0x38] sm:$0xff]
        %v665 = vld [vmem:[%s201 + $0x40] sm:$0xff]
        %v666 = vld [vmem:[%s201 + $0x48] sm:$0xff]
        %v667 = vld [vmem:[%s201 + $0x50] sm:$0xff]
        %v668 = vld [vmem:[%s201 + $0x58] sm:$0xff]
        %v669 = vld [vmem:[%s201 + $0x60] sm:$0xff]
        %v670 = vld [vmem:[%s201 + $0x68] sm:$0xff]
        %v671 = vld [vmem:[%s201 + $0x70] sm:$0xff]
        %v672 = vld [vmem:[%s201 + $0x78] sm:$0xff]
        %v673 = vld [vmem:[%s201 + $0x80] sm:$0xff]
        %v674 = vld [vmem:[%s201 + $0x88] sm:$0xff]
        %676 = vset.pattern.permute.xlu0 0
        %677 = vperm.xlu0 %676, %v657
        %v678 = vpop.permute.xlu0 %677
        %681 = vset.pattern.permute.xlu0 0
        %682 = vperm.xlu0 %681, %v658
        %v683 = vpop.permute.xlu0 %682
        %686 = vset.pattern.permute.xlu0 0
        %687 = vperm.xlu0 %686, %v659
        %v688 = vpop.permute.xlu0 %687
        %691 = vset.pattern.permute.xlu0 0
        %692 = vperm.xlu0 %691, %v660
        %v693 = vpop.permute.xlu0 %692
        %696 = vset.pattern.permute.xlu0 0
        %697 = vperm.xlu0 %696, %v661
        %v698 = vpop.permute.xlu0 %697
        %701 = vset.pattern.permute.xlu0 0
        %702 = vperm.xlu0 %701, %v662
        %v703 = vpop.permute.xlu0 %702
        %706 = vset.pattern.permute.xlu0 0
        %707 = vperm.xlu0 %706, %v663
        %v708 = vpop.permute.xlu0 %707
        %711 = vset.pattern.permute.xlu0 0
        %712 = vperm.xlu0 %711, %v664
        %v713 = vpop.permute.xlu0 %712
        %716 = vset.pattern.permute.xlu0 0
        %717 = vperm.xlu0 %716, %v665
        %v718 = vpop.permute.xlu0 %717
        %721 = vset.pattern.permute.xlu0 0
        %722 = vperm.xlu0 %721, %v666
        %v723 = vpop.permute.xlu0 %722
        %726 = vset.pattern.permute.xlu0 0
        %727 = vperm.xlu0 %726, %v667
        %v728 = vpop.permute.xlu0 %727
        %731 = vset.pattern.permute.xlu0 0
        %732 = vperm.xlu0 %731, %v668
        %v733 = vpop.permute.xlu0 %732
        %736 = vset.pattern.permute.xlu0 0
        %737 = vperm.xlu0 %736, %v669
        %v738 = vpop.permute.xlu0 %737
        %741 = vset.pattern.permute.xlu0 0
        %742 = vperm.xlu0 %741, %v670
        %v743 = vpop.permute.xlu0 %742
        %746 = vset.pattern.permute.xlu0 0
        %747 = vperm.xlu0 %746, %v671
        %v748 = vpop.permute.xlu0 %747
        %751 = vset.pattern.permute.xlu0 0
        %752 = vperm.xlu0 %751, %v672
        %v753 = vpop.permute.xlu0 %752
        %756 = vset.pattern.permute.xlu0 0
        %757 = vperm.xlu0 %756, %v673
        %v758 = vpop.permute.xlu0 %757
        %761 = vset.pattern.permute.xlu0 0
        %762 = vperm.xlu0 %761, %v674
        %v763 = vpop.permute.xlu0 %762
        %v765 = vmul.f32 %v207, %v678
        %v766 = vmul.f32 %v208, %v678
        %v767 = vmul.f32 %v209, %v678
        %v768 = vmul.f32 %v210, %v678
        %v769 = vmul.f32 %v211, %v678
        %v770 = vmul.f32 %v212, %v678
        %v771 = vmul.f32 %v213, %v678
        %v772 = vmul.f32 %v214, %v678
        %v773 = vmul.f32 %v215, %v678
        %v774 = vmul.f32 %v216, %v678
        %v775 = vmul.f32 %v217, %v678
        %v776 = vmul.f32 %v218, %v678
        %v777 = vmul.f32 %v219, %v678
        %v778 = vmul.f32 %v220, %v678
        %v779 = vmul.f32 %v221, %v678
        %v780 = vmul.f32 %v222, %v678
        %v781 = vmul.f32 %v223, %v678
        %v782 = vmul.f32 %v224, %v678
        %v783 = vmul.f32 %v225, %v678
        %v784 = vmul.f32 %v226, %v678
        %v785 = vmul.f32 %v227, %v678
        %v786 = vmul.f32 %v228, %v678
        %v787 = vmul.f32 %v229, %v678
        %v788 = vmul.f32 %v230, %v678
        %v789 = vmul.f32 %v231, %v678
        %v790 = vmul.f32 %v232, %v683
        %v791 = vmul.f32 %v233, %v683
        %v792 = vmul.f32 %v234, %v683
        %v793 = vmul.f32 %v235, %v683
        %v794 = vmul.f32 %v236, %v683
        %v795 = vmul.f32 %v237, %v683
        %v796 = vmul.f32 %v238, %v683
        %v797 = vmul.f32 %v239, %v683
        %v798 = vmul.f32 %v240, %v683
        %v799 = vmul.f32 %v241, %v683
        %v800 = vmul.f32 %v242, %v683
        %v801 = vmul.f32 %v243, %v683
        %v802 = vmul.f32 %v244, %v683
        %v803 = vmul.f32 %v245, %v683
        %v804 = vmul.f32 %v246, %v683
        %v805 = vmul.f32 %v247, %v683
        %v806 = vmul.f32 %v248, %v683
        %v807 = vmul.f32 %v249, %v683
        %v808 = vmul.f32 %v250, %v683
        %v809 = vmul.f32 %v251, %v683
        %v810 = vmul.f32 %v252, %v683
        %v811 = vmul.f32 %v253, %v683
        %v812 = vmul.f32 %v254, %v683
        %v813 = vmul.f32 %v255, %v683
        %v814 = vmul.f32 %v256, %v683
        %v815 = vmul.f32 %v257, %v688
        %v816 = vmul.f32 %v258, %v688
        %v817 = vmul.f32 %v259, %v688
        %v818 = vmul.f32 %v260, %v688
        %v819 = vmul.f32 %v261, %v688
        %v820 = vmul.f32 %v262, %v688
        %v821 = vmul.f32 %v263, %v688
        %v822 = vmul.f32 %v264, %v688
        %v823 = vmul.f32 %v265, %v688
        %v824 = vmul.f32 %v266, %v688
        %v825 = vmul.f32 %v267, %v688
        %v826 = vmul.f32 %v268, %v688
        %v827 = vmul.f32 %v269, %v688
        %v828 = vmul.f32 %v270, %v688
        %v829 = vmul.f32 %v271, %v688
        %v830 = vmul.f32 %v272, %v688
        %v831 = vmul.f32 %v273, %v688
        %v832 = vmul.f32 %v274, %v688
        %v833 = vmul.f32 %v275, %v688
        %v834 = vmul.f32 %v276, %v688
        %v835 = vmul.f32 %v277, %v688
        %v836 = vmul.f32 %v278, %v688
        %v837 = vmul.f32 %v279, %v688
        %v838 = vmul.f32 %v280, %v688
        %v839 = vmul.f32 %v281, %v688
        %v840 = vmul.f32 %v282, %v693
        %v841 = vmul.f32 %v283, %v693
        %v842 = vmul.f32 %v284, %v693
        %v843 = vmul.f32 %v285, %v693
        %v844 = vmul.f32 %v286, %v693
        %v845 = vmul.f32 %v287, %v693
        %v846 = vmul.f32 %v288, %v693
        %v847 = vmul.f32 %v289, %v693
        %v848 = vmul.f32 %v290, %v693
        %v849 = vmul.f32 %v291, %v693
        %v850 = vmul.f32 %v292, %v693
        %v851 = vmul.f32 %v293, %v693
        %v852 = vmul.f32 %v294, %v693
        %v853 = vmul.f32 %v295, %v693
        %v854 = vmul.f32 %v296, %v693
        %v855 = vmul.f32 %v297, %v693
        %v856 = vmul.f32 %v298, %v693
        %v857 = vmul.f32 %v299, %v693
        %v858 = vmul.f32 %v300, %v693
        %v859 = vmul.f32 %v301, %v693
        %v860 = vmul.f32 %v302, %v693
        %v861 = vmul.f32 %v303, %v693
        %v862 = vmul.f32 %v304, %v693
        %v863 = vmul.f32 %v305, %v693
        %v864 = vmul.f32 %v306, %v693
        %v865 = vmul.f32 %v307, %v698
        %v866 = vmul.f32 %v308, %v698
        %v867 = vmul.f32 %v309, %v698
        %v868 = vmul.f32 %v310, %v698
        %v869 = vmul.f32 %v311, %v698
        %v870 = vmul.f32 %v312, %v698
        %v871 = vmul.f32 %v313, %v698
        %v872 = vmul.f32 %v314, %v698
        %v873 = vmul.f32 %v315, %v698
        %v874 = vmul.f32 %v316, %v698
        %v875 = vmul.f32 %v317, %v698
        %v876 = vmul.f32 %v318, %v698
        %v877 = vmul.f32 %v319, %v698
        %v878 = vmul.f32 %v320, %v698
        %v879 = vmul.f32 %v321, %v698
        %v880 = vmul.f32 %v322, %v698
        %v881 = vmul.f32 %v323, %v698
        %v882 = vmul.f32 %v324, %v698
        %v883 = vmul.f32 %v325, %v698
        %v884 = vmul.f32 %v326, %v698
        %v885 = vmul.f32 %v327, %v698
        %v886 = vmul.f32 %v328, %v698
        %v887 = vmul.f32 %v329, %v698
        %v888 = vmul.f32 %v330, %v698
        %v889 = vmul.f32 %v331, %v698
        %v890 = vmul.f32 %v332, %v703
        %v891 = vmul.f32 %v333, %v703
        %v892 = vmul.f32 %v334, %v703
        %v893 = vmul.f32 %v335, %v703
        %v894 = vmul.f32 %v336, %v703
        %v895 = vmul.f32 %v337, %v703
        %v896 = vmul.f32 %v338, %v703
        %v897 = vmul.f32 %v339, %v703
        %v898 = vmul.f32 %v340, %v703
        %v899 = vmul.f32 %v341, %v703
        %v900 = vmul.f32 %v342, %v703
        %v901 = vmul.f32 %v343, %v703
        %v902 = vmul.f32 %v344, %v703
        %v903 = vmul.f32 %v345, %v703
        %v904 = vmul.f32 %v346, %v703
        %v905 = vmul.f32 %v347, %v703
        %v906 = vmul.f32 %v348, %v703
        %v907 = vmul.f32 %v349, %v703
        %v908 = vmul.f32 %v350, %v703
        %v909 = vmul.f32 %v351, %v703
        %v910 = vmul.f32 %v352, %v703
        %v911 = vmul.f32 %v353, %v703
        %v912 = vmul.f32 %v354, %v703
        %v913 = vmul.f32 %v355, %v703
        %v914 = vmul.f32 %v356, %v703
        %v915 = vmul.f32 %v357, %v708
        %v916 = vmul.f32 %v358, %v708
        %v917 = vmul.f32 %v359, %v708
        %v918 = vmul.f32 %v360, %v708
        %v919 = vmul.f32 %v361, %v708
        %v920 = vmul.f32 %v362, %v708
        %v921 = vmul.f32 %v363, %v708
        %v922 = vmul.f32 %v364, %v708
        %v923 = vmul.f32 %v365, %v708
        %v924 = vmul.f32 %v366, %v708
        %v925 = vmul.f32 %v367, %v708
        %v926 = vmul.f32 %v368, %v708
        %v927 = vmul.f32 %v369, %v708
        %v928 = vmul.f32 %v370, %v708
        %v929 = vmul.f32 %v371, %v708
        %v930 = vmul.f32 %v372, %v708
        %v931 = vmul.f32 %v373, %v708
        %v932 = vmul.f32 %v374, %v708
        %v933 = vmul.f32 %v375, %v708
        %v934 = vmul.f32 %v376, %v708
        %v935 = vmul.f32 %v377, %v708
        %v936 = vmul.f32 %v378, %v708
        %v937 = vmul.f32 %v379, %v708
        %v938 = vmul.f32 %v380, %v708
        %v939 = vmul.f32 %v381, %v708
        %v940 = vmul.f32 %v382, %v713
        %v941 = vmul.f32 %v383, %v713
        %v942 = vmul.f32 %v384, %v713
        %v943 = vmul.f32 %v385, %v713
        %v944 = vmul.f32 %v386, %v713
        %v945 = vmul.f32 %v387, %v713
        %v946 = vmul.f32 %v388, %v713
        %v947 = vmul.f32 %v389, %v713
        %v948 = vmul.f32 %v390, %v713
        %v949 = vmul.f32 %v391, %v713
        %v950 = vmul.f32 %v392, %v713
        %v951 = vmul.f32 %v393, %v713
        %v952 = vmul.f32 %v394, %v713
        %v953 = vmul.f32 %v395, %v713
        %v954 = vmul.f32 %v396, %v713
        %v955 = vmul.f32 %v397, %v713
        %v956 = vmul.f32 %v398, %v713
        %v957 = vmul.f32 %v399, %v713
        %v958 = vmul.f32 %v400, %v713
        %v959 = vmul.f32 %v401, %v713
        %v960 = vmul.f32 %v402, %v713
        %v961 = vmul.f32 %v403, %v713
        %v962 = vmul.f32 %v404, %v713
        %v963 = vmul.f32 %v405, %v713
        %v964 = vmul.f32 %v406, %v713
        %v965 = vmul.f32 %v407, %v718
        %v966 = vmul.f32 %v408, %v718
        %v967 = vmul.f32 %v409, %v718
        %v968 = vmul.f32 %v410, %v718
        %v969 = vmul.f32 %v411, %v718
        %v970 = vmul.f32 %v412, %v718
        %v971 = vmul.f32 %v413, %v718
        %v972 = vmul.f32 %v414, %v718
        %v973 = vmul.f32 %v415, %v718
        %v974 = vmul.f32 %v416, %v718
        %v975 = vmul.f32 %v417, %v718
        %v976 = vmul.f32 %v418, %v718
        %v977 = vmul.f32 %v419, %v718
        %v978 = vmul.f32 %v420, %v718
        %v979 = vmul.f32 %v421, %v718
        %v980 = vmul.f32 %v422, %v718
        %v981 = vmul.f32 %v423, %v718
        %v982 = vmul.f32 %v424, %v718
        %v983 = vmul.f32 %v425, %v718
        %v984 = vmul.f32 %v426, %v718
        %v985 = vmul.f32 %v427, %v718
        %v986 = vmul.f32 %v428, %v718
        %v987 = vmul.f32 %v429, %v718
        %v988 = vmul.f32 %v430, %v718
        %v989 = vmul.f32 %v431, %v718
        %v990 = vmul.f32 %v432, %v723
        %v991 = vmul.f32 %v433, %v723
        %v992 = vmul.f32 %v434, %v723
        %v993 = vmul.f32 %v435, %v723
        %v994 = vmul.f32 %v436, %v723
        %v995 = vmul.f32 %v437, %v723
        %v996 = vmul.f32 %v438, %v723
        %v997 = vmul.f32 %v439, %v723
        %v998 = vmul.f32 %v440, %v723
        %v999 = vmul.f32 %v441, %v723
        %v1000 = vmul.f32 %v442, %v723
        %v1001 = vmul.f32 %v443, %v723
        %v1002 = vmul.f32 %v444, %v723
        %v1003 = vmul.f32 %v445, %v723
        %v1004 = vmul.f32 %v446, %v723
        %v1005 = vmul.f32 %v447, %v723
        %v1006 = vmul.f32 %v448, %v723
        %v1007 = vmul.f32 %v449, %v723
        %v1008 = vmul.f32 %v450, %v723
        %v1009 = vmul.f32 %v451, %v723
        %v1010 = vmul.f32 %v452, %v723
        %v1011 = vmul.f32 %v453, %v723
        %v1012 = vmul.f32 %v454, %v723
        %v1013 = vmul.f32 %v455, %v723
        %v1014 = vmul.f32 %v456, %v723
        %v1015 = vmul.f32 %v457, %v728
        %v1016 = vmul.f32 %v458, %v728
        %v1017 = vmul.f32 %v459, %v728
        %v1018 = vmul.f32 %v460, %v728
        %v1019 = vmul.f32 %v461, %v728
        %v1020 = vmul.f32 %v462, %v728
        %v1021 = vmul.f32 %v463, %v728
        %v1022 = vmul.f32 %v464, %v728
        %v1023 = vmul.f32 %v465, %v728
        %v1024 = vmul.f32 %v466, %v728
        %v1025 = vmul.f32 %v467, %v728
        %v1026 = vmul.f32 %v468, %v728
        %v1027 = vmul.f32 %v469, %v728
        %v1028 = vmul.f32 %v470, %v728
        %v1029 = vmul.f32 %v471, %v728
        %v1030 = vmul.f32 %v472, %v728
        %v1031 = vmul.f32 %v473, %v728
        %v1032 = vmul.f32 %v474, %v728
        %v1033 = vmul.f32 %v475, %v728
        %v1034 = vmul.f32 %v476, %v728
        %v1035 = vmul.f32 %v477, %v728
        %v1036 = vmul.f32 %v478, %v728
        %v1037 = vmul.f32 %v479, %v728
        %v1038 = vmul.f32 %v480, %v728
        %v1039 = vmul.f32 %v481, %v728
        %v1040 = vmul.f32 %v482, %v733
        %v1041 = vmul.f32 %v483, %v733
        %v1042 = vmul.f32 %v484, %v733
        %v1043 = vmul.f32 %v485, %v733
        %v1044 = vmul.f32 %v486, %v733
        %v1045 = vmul.f32 %v487, %v733
        %v1046 = vmul.f32 %v488, %v733
        %v1047 = vmul.f32 %v489, %v733
        %v1048 = vmul.f32 %v490, %v733
        %v1049 = vmul.f32 %v491, %v733
        %v1050 = vmul.f32 %v492, %v733
        %v1051 = vmul.f32 %v493, %v733
        %v1052 = vmul.f32 %v494, %v733
        %v1053 = vmul.f32 %v495, %v733
        %v1054 = vmul.f32 %v496, %v733
        %v1055 = vmul.f32 %v497, %v733
        %v1056 = vmul.f32 %v498, %v733
        %v1057 = vmul.f32 %v499, %v733
        %v1058 = vmul.f32 %v500, %v733
        %v1059 = vmul.f32 %v501, %v733
        %v1060 = vmul.f32 %v502, %v733
        %v1061 = vmul.f32 %v503, %v733
        %v1062 = vmul.f32 %v504, %v733
        %v1063 = vmul.f32 %v505, %v733
        %v1064 = vmul.f32 %v506, %v733
        %v1065 = vmul.f32 %v507, %v738
        %v1066 = vmul.f32 %v508, %v738
        %v1067 = vmul.f32 %v509, %v738
        %v1068 = vmul.f32 %v510, %v738
        %v1069 = vmul.f32 %v511, %v738
        %v1070 = vmul.f32 %v512, %v738
        %v1071 = vmul.f32 %v513, %v738
        %v1072 = vmul.f32 %v514, %v738
        %v1073 = vmul.f32 %v515, %v738
        %v1074 = vmul.f32 %v516, %v738
        %v1075 = vmul.f32 %v517, %v738
        %v1076 = vmul.f32 %v518, %v738
        %v1077 = vmul.f32 %v519, %v738
        %v1078 = vmul.f32 %v520, %v738
        %v1079 = vmul.f32 %v521, %v738
        %v1080 = vmul.f32 %v522, %v738
        %v1081 = vmul.f32 %v523, %v738
        %v1082 = vmul.f32 %v524, %v738
        %v1083 = vmul.f32 %v525, %v738
        %v1084 = vmul.f32 %v526, %v738
        %v1085 = vmul.f32 %v527, %v738
        %v1086 = vmul.f32 %v528, %v738
        %v1087 = vmul.f32 %v529, %v738
        %v1088 = vmul.f32 %v530, %v738
        %v1089 = vmul.f32 %v531, %v738
        %v1090 = vmul.f32 %v532, %v743
        %v1091 = vmul.f32 %v533, %v743
        %v1092 = vmul.f32 %v534, %v743
        %v1093 = vmul.f32 %v535, %v743
        %v1094 = vmul.f32 %v536, %v743
        %v1095 = vmul.f32 %v537, %v743
        %v1096 = vmul.f32 %v538, %v743
        %v1097 = vmul.f32 %v539, %v743
        %v1098 = vmul.f32 %v540, %v743
        %v1099 = vmul.f32 %v541, %v743
        %v1100 = vmul.f32 %v542, %v743
        %v1101 = vmul.f32 %v543, %v743
        %v1102 = vmul.f32 %v544, %v743
        %v1103 = vmul.f32 %v545, %v743
        %v1104 = vmul.f32 %v546, %v743
        %v1105 = vmul.f32 %v547, %v743
        %v1106 = vmul.f32 %v548, %v743
        %v1107 = vmul.f32 %v549, %v743
        %v1108 = vmul.f32 %v550, %v743
        %v1109 = vmul.f32 %v551, %v743
        %v1110 = vmul.f32 %v552, %v743
        %v1111 = vmul.f32 %v553, %v743
        %v1112 = vmul.f32 %v554, %v743
        %v1113 = vmul.f32 %v555, %v743
        %v1114 = vmul.f32 %v556, %v743
        %v1115 = vmul.f32 %v557, %v748
        %v1116 = vmul.f32 %v558, %v748
        %v1117 = vmul.f32 %v559, %v748
        %v1118 = vmul.f32 %v560, %v748
        %v1119 = vmul.f32 %v561, %v748
        %v1120 = vmul.f32 %v562, %v748
        %v1121 = vmul.f32 %v563, %v748
        %v1122 = vmul.f32 %v564, %v748
        %v1123 = vmul.f32 %v565, %v748
        %v1124 = vmul.f32 %v566, %v748
        %v1125 = vmul.f32 %v567, %v748
        %v1126 = vmul.f32 %v568, %v748
        %v1127 = vmul.f32 %v569, %v748
        %v1128 = vmul.f32 %v570, %v748
        %v1129 = vmul.f32 %v571, %v748
        %v1130 = vmul.f32 %v572, %v748
        %v1131 = vmul.f32 %v573, %v748
        %v1132 = vmul.f32 %v574, %v748
        %v1133 = vmul.f32 %v575, %v748
        %v1134 = vmul.f32 %v576, %v748
        %v1135 = vmul.f32 %v577, %v748
        %v1136 = vmul.f32 %v578, %v748
        %v1137 = vmul.f32 %v579, %v748
        %v1138 = vmul.f32 %v580, %v748
        %v1139 = vmul.f32 %v581, %v748
        %v1140 = vmul.f32 %v582, %v753
        %v1141 = vmul.f32 %v583, %v753
        %v1142 = vmul.f32 %v584, %v753
        %v1143 = vmul.f32 %v585, %v753
        %v1144 = vmul.f32 %v586, %v753
        %v1145 = vmul.f32 %v587, %v753
        %v1146 = vmul.f32 %v588, %v753
        %v1147 = vmul.f32 %v589, %v753
        %v1148 = vmul.f32 %v590, %v753
        %v1149 = vmul.f32 %v591, %v753
        %v1150 = vmul.f32 %v592, %v753
        %v1151 = vmul.f32 %v593, %v753
        %v1152 = vmul.f32 %v594, %v753
        %v1153 = vmul.f32 %v595, %v753
        %v1154 = vmul.f32 %v596, %v753
        %v1155 = vmul.f32 %v597, %v753
        %v1156 = vmul.f32 %v598, %v753
        %v1157 = vmul.f32 %v599, %v753
        %v1158 = vmul.f32 %v600, %v753
        %v1159 = vmul.f32 %v601, %v753
        %v1160 = vmul.f32 %v602, %v753
        %v1161 = vmul.f32 %v603, %v753
        %v1162 = vmul.f32 %v604, %v753
        %v1163 = vmul.f32 %v605, %v753
        %v1164 = vmul.f32 %v606, %v753
        %v1165 = vmul.f32 %v607, %v758
        %v1166 = vmul.f32 %v608, %v758
        %v1167 = vmul.f32 %v609, %v758
        %v1168 = vmul.f32 %v610, %v758
        %v1169 = vmul.f32 %v611, %v758
        %v1170 = vmul.f32 %v612, %v758
        %v1171 = vmul.f32 %v613, %v758
        %v1172 = vmul.f32 %v614, %v758
        %v1173 = vmul.f32 %v615, %v758
        %v1174 = vmul.f32 %v616, %v758
        %v1175 = vmul.f32 %v617, %v758
        %v1176 = vmul.f32 %v618, %v758
        %v1177 = vmul.f32 %v619, %v758
        %v1178 = vmul.f32 %v620, %v758
        %v1179 = vmul.f32 %v621, %v758
        %v1180 = vmul.f32 %v622, %v758
        %v1181 = vmul.f32 %v623, %v758
        %v1182 = vmul.f32 %v624, %v758
        %v1183 = vmul.f32 %v625, %v758
        %v1184 = vmul.f32 %v626, %v758
        %v1185 = vmul.f32 %v627, %v758
        %v1186 = vmul.f32 %v628, %v758
        %v1187 = vmul.f32 %v629, %v758
        %v1188 = vmul.f32 %v630, %v758
        %v1189 = vmul.f32 %v631, %v758
        %v1190 = vmul.f32 %v632, %v763
        %v1191 = vmul.f32 %v633, %v763
        %v1192 = vmul.f32 %v634, %v763
        %v1193 = vmul.f32 %v635, %v763
        %v1194 = vmul.f32 %v636, %v763
        %v1195 = vmul.f32 %v637, %v763
        %v1196 = vmul.f32 %v638, %v763
        %v1197 = vmul.f32 %v639, %v763
        %v1198 = vmul.f32 %v640, %v763
        %v1199 = vmul.f32 %v641, %v763
        %v1200 = vmul.f32 %v642, %v763
        %v1201 = vmul.f32 %v643, %v763
        %v1202 = vmul.f32 %v644, %v763
        %v1203 = vmul.f32 %v645, %v763
        %v1204 = vmul.f32 %v646, %v763
        %v1205 = vmul.f32 %v647, %v763
        %v1206 = vmul.f32 %v648, %v763
        %v1207 = vmul.f32 %v649, %v763
        %v1208 = vmul.f32 %v650, %v763
        %v1209 = vmul.f32 %v651, %v763
        %v1210 = vmul.f32 %v652, %v763
        %v1211 = vmul.f32 %v653, %v763
        %v1212 = vmul.f32 %v654, %v763
        %v1213 = vmul.f32 %v655, %v763
        %v1214 = vmul.f32 %v656, %v763
        %1215 = vst [vmem:[%s196] sm:$0xff] %v765
        %1216 = vst [vmem:[%s196 + $0x8] sm:$0xff] %v766
        %1217 = vst [vmem:[%s196 + $0x10] sm:$0xff] %v767
        %1218 = vst [vmem:[%s196 + $0x18] sm:$0xff] %v768
        %1219 = vst [vmem:[%s196 + $0x20] sm:$0xff] %v769
        %1220 = vst [vmem:[%s196 + $0x28] sm:$0xff] %v770
        %1221 = vst [vmem:[%s196 + $0x30] sm:$0xff] %v771
        %1222 = vst [vmem:[%s196 + $0x38] sm:$0xff] %v772
        %1223 = vst [vmem:[%s196 + $0x40] sm:$0xff] %v773
        %1224 = vst [vmem:[%s196 + $0x48] sm:$0xff] %v774
        %1225 = vst [vmem:[%s196 + $0x50] sm:$0xff] %v775
        %1226 = vst [vmem:[%s196 + $0x58] sm:$0xff] %v776
        %1227 = vst [vmem:[%s196 + $0x60] sm:$0xff] %v777
        %1228 = vst [vmem:[%s196 + $0x68] sm:$0xff] %v778
        %1229 = vst [vmem:[%s196 + $0x70] sm:$0xff] %v779
        %1230 = vst [vmem:[%s196 + $0x78] sm:$0xff] %v780
        %1231 = vst [vmem:[%s196 + $0x80] sm:$0xff] %v781
        %1232 = vst [vmem:[%s196 + $0x88] sm:$0xff] %v782
        %1233 = vst [vmem:[%s196 + $0x90] sm:$0xff] %v783
        %1234 = vst [vmem:[%s196 + $0x98] sm:$0xff] %v784
        %1235 = vst [vmem:[%s196 + $0xa0] sm:$0xff] %v785
        %1236 = vst [vmem:[%s196 + $0xa8] sm:$0xff] %v786
        %1237 = vst [vmem:[%s196 + $0xb0] sm:$0xff] %v787
        %1238 = vst [vmem:[%s196 + $0xb8] sm:$0xff] %v788
        %vm1239 = vcmask 523264
        %1240 = vst.msk [vmem:[%s196 + $0xc0] sm:$0xff] %vm1239, %v789
        %1241 = vst [vmem:[%s196 + $0xc8] sm:$0xff] %v790
        %1242 = vst [vmem:[%s196 + $0xd0] sm:$0xff] %v791
        %1243 = vst [vmem:[%s196 + $0xd8] sm:$0xff] %v792
        %1244 = vst [vmem:[%s196 + $0xe0] sm:$0xff] %v793
        %1245 = vst [vmem:[%s196 + $0xe8] sm:$0xff] %v794
        %1246 = vst [vmem:[%s196 + $0xf0] sm:$0xff] %v795
        %1247 = vst [vmem:[%s196 + $0xf8] sm:$0xff] %v796
        %1248 = vst [vmem:[%s196 + $0x100] sm:$0xff] %v797
        %1249 = vst [vmem:[%s196 + $0x108] sm:$0xff] %v798
        %1250 = vst [vmem:[%s196 + $0x110] sm:$0xff] %v799
        %1251 = vst [vmem:[%s196 + $0x118] sm:$0xff] %v800
        %1252 = vst [vmem:[%s196 + $0x120] sm:$0xff] %v801
        %1253 = vst [vmem:[%s196 + $0x128] sm:$0xff] %v802
        %1254 = vst [vmem:[%s196 + $0x130] sm:$0xff] %v803
        %1255 = vst [vmem:[%s196 + $0x138] sm:$0xff] %v804
        %1256 = vst [vmem:[%s196 + $0x140] sm:$0xff] %v805
        %1257 = vst [vmem:[%s196 + $0x148] sm:$0xff] %v806
        %1258 = vst [vmem:[%s196 + $0x150] sm:$0xff] %v807
        %1259 = vst [vmem:[%s196 + $0x158] sm:$0xff] %v808
        %1260 = vst [vmem:[%s196 + $0x160] sm:$0xff] %v809
        %1261 = vst [vmem:[%s196 + $0x168] sm:$0xff] %v810
        %1262 = vst [vmem:[%s196 + $0x170] sm:$0xff] %v811
        %1263 = vst [vmem:[%s196 + $0x178] sm:$0xff] %v812
        %1264 = vst [vmem:[%s196 + $0x180] sm:$0xff] %v813
        %1265 = vst.msk [vmem:[%s196 + $0x188] sm:$0xff] %vm1239, %v814
        %1266 = vst [vmem:[%s196 + $0x190] sm:$0xff] %v815
        %1267 = vst [vmem:[%s196 + $0x198] sm:$0xff] %v816
        %1268 = vst [vmem:[%s196 + $0x1a0] sm:$0xff] %v817
        %1269 = vst [vmem:[%s196 + $0x1a8] sm:$0xff] %v818
        %1270 = vst [vmem:[%s196 + $0x1b0] sm:$0xff] %v819
        %1271 = vst [vmem:[%s196 + $0x1b8] sm:$0xff] %v820
        %1272 = vst [vmem:[%s196 + $0x1c0] sm:$0xff] %v821
        %1273 = vst [vmem:[%s196 + $0x1c8] sm:$0xff] %v822
        %1274 = vst [vmem:[%s196 + $0x1d0] sm:$0xff] %v823
        %1275 = vst [vmem:[%s196 + $0x1d8] sm:$0xff] %v824
        %1276 = vst [vmem:[%s196 + $0x1e0] sm:$0xff] %v825
        %1277 = vst [vmem:[%s196 + $0x1e8] sm:$0xff] %v826
        %1278 = vst [vmem:[%s196 + $0x1f0] sm:$0xff] %v827
        %1279 = vst [vmem:[%s196 + $0x1f8] sm:$0xff] %v828
        %1280 = vst [vmem:[%s196 + $0x200] sm:$0xff] %v829
        %1281 = vst [vmem:[%s196 + $0x208] sm:$0xff] %v830
        %1282 = vst [vmem:[%s196 + $0x210] sm:$0xff] %v831
        %1283 = vst [vmem:[%s196 + $0x218] sm:$0xff] %v832
        %1284 = vst [vmem:[%s196 + $0x220] sm:$0xff] %v833
        %1285 = vst [vmem:[%s196 + $0x228] sm:$0xff] %v834
        %1286 = vst [vmem:[%s196 + $0x230] sm:$0xff] %v835
        %1287 = vst [vmem:[%s196 + $0x238] sm:$0xff] %v836
        %1288 = vst [vmem:[%s196 + $0x240] sm:$0xff] %v837
        %1289 = vst [vmem:[%s196 + $0x248] sm:$0xff] %v838
        %1290 = vst.msk [vmem:[%s196 + $0x250] sm:$0xff] %vm1239, %v839
        %1291 = vst [vmem:[%s196 + $0x258] sm:$0xff] %v840
        %1292 = vst [vmem:[%s196 + $0x260] sm:$0xff] %v841
        %1293 = vst [vmem:[%s196 + $0x268] sm:$0xff] %v842
        %1294 = vst [vmem:[%s196 + $0x270] sm:$0xff] %v843
        %1295 = vst [vmem:[%s196 + $0x278] sm:$0xff] %v844
        %1296 = vst [vmem:[%s196 + $0x280] sm:$0xff] %v845
        %1297 = vst [vmem:[%s196 + $0x288] sm:$0xff] %v846
        %1298 = vst [vmem:[%s196 + $0x290] sm:$0xff] %v847
        %1299 = vst [vmem:[%s196 + $0x298] sm:$0xff] %v848
        %1300 = vst [vmem:[%s196 + $0x2a0] sm:$0xff] %v849
        %1301 = vst [vmem:[%s196 + $0x2a8] sm:$0xff] %v850
        %1302 = vst [vmem:[%s196 + $0x2b0] sm:$0xff] %v851
        %1303 = vst [vmem:[%s196 + $0x2b8] sm:$0xff] %v852
        %1304 = vst [vmem:[%s196 + $0x2c0] sm:$0xff] %v853
        %1305 = vst [vmem:[%s196 + $0x2c8] sm:$0xff] %v854
        %1306 = vst [vmem:[%s196 + $0x2d0] sm:$0xff] %v855
        %1307 = vst [vmem:[%s196 + $0x2d8] sm:$0xff] %v856
        %1308 = vst [vmem:[%s196 + $0x2e0] sm:$0xff] %v857
        %1309 = vst [vmem:[%s196 + $0x2e8] sm:$0xff] %v858
        %1310 = vst [vmem:[%s196 + $0x2f0] sm:$0xff] %v859
        %1311 = vst [vmem:[%s196 + $0x2f8] sm:$0xff] %v860
        %1312 = vst [vmem:[%s196 + $0x300] sm:$0xff] %v861
        %1313 = vst [vmem:[%s196 + $0x308] sm:$0xff] %v862
        %1314 = vst [vmem:[%s196 + $0x310] sm:$0xff] %v863
        %1315 = vst.msk [vmem:[%s196 + $0x318] sm:$0xff] %vm1239, %v864
        %1316 = vst [vmem:[%s196 + $0x320] sm:$0xff] %v865
        %1317 = vst [vmem:[%s196 + $0x328] sm:$0xff] %v866
        %1318 = vst [vmem:[%s196 + $0x330] sm:$0xff] %v867
        %1319 = vst [vmem:[%s196 + $0x338] sm:$0xff] %v868
        %1320 = vst [vmem:[%s196 + $0x340] sm:$0xff] %v869
        %1321 = vst [vmem:[%s196 + $0x348] sm:$0xff] %v870
        %1322 = vst [vmem:[%s196 + $0x350] sm:$0xff] %v871
        %1323 = vst [vmem:[%s196 + $0x358] sm:$0xff] %v872
        %1324 = vst [vmem:[%s196 + $0x360] sm:$0xff] %v873
        %1325 = vst [vmem:[%s196 + $0x368] sm:$0xff] %v874
        %1326 = vst [vmem:[%s196 + $0x370] sm:$0xff] %v875
        %1327 = vst [vmem:[%s196 + $0x378] sm:$0xff] %v876
        %1328 = vst [vmem:[%s196 + $0x380] sm:$0xff] %v877
        %1329 = vst [vmem:[%s196 + $0x388] sm:$0xff] %v878
        %1330 = vst [vmem:[%s196 + $0x390] sm:$0xff] %v879
        %1331 = vst [vmem:[%s196 + $0x398] sm:$0xff] %v880
        %1332 = vst [vmem:[%s196 + $0x3a0] sm:$0xff] %v881
        %1333 = vst [vmem:[%s196 + $0x3a8] sm:$0xff] %v882
        %1334 = vst [vmem:[%s196 + $0x3b0] sm:$0xff] %v883
        %1335 = vst [vmem:[%s196 + $0x3b8] sm:$0xff] %v884
        %1336 = vst [vmem:[%s196 + $0x3c0] sm:$0xff] %v885
        %1337 = vst [vmem:[%s196 + $0x3c8] sm:$0xff] %v886
        %1338 = vst [vmem:[%s196 + $0x3d0] sm:$0xff] %v887
        %1339 = vst [vmem:[%s196 + $0x3d8] sm:$0xff] %v888
        %1340 = vst.msk [vmem:[%s196 + $0x3e0] sm:$0xff] %vm1239, %v889
        %1341 = vst [vmem:[%s196 + $0x3e8] sm:$0xff] %v890
        %1342 = vst [vmem:[%s196 + $0x3f0] sm:$0xff] %v891
        %1343 = vst [vmem:[%s196 + $0x3f8] sm:$0xff] %v892
        %1344 = vst [vmem:[%s196 + $0x400] sm:$0xff] %v893
        %1345 = vst [vmem:[%s196 + $0x408] sm:$0xff] %v894
        %1346 = vst [vmem:[%s196 + $0x410] sm:$0xff] %v895
        %1347 = vst [vmem:[%s196 + $0x418] sm:$0xff] %v896
        %1348 = vst [vmem:[%s196 + $0x420] sm:$0xff] %v897
        %1349 = vst [vmem:[%s196 + $0x428] sm:$0xff] %v898
        %1350 = vst [vmem:[%s196 + $0x430] sm:$0xff] %v899
        %1351 = vst [vmem:[%s196 + $0x438] sm:$0xff] %v900
        %1352 = vst [vmem:[%s196 + $0x440] sm:$0xff] %v901
        %1353 = vst [vmem:[%s196 + $0x448] sm:$0xff] %v902
        %1354 = vst [vmem:[%s196 + $0x450] sm:$0xff] %v903
        %1355 = vst [vmem:[%s196 + $0x458] sm:$0xff] %v904
        %1356 = vst [vmem:[%s196 + $0x460] sm:$0xff] %v905
        %1357 = vst [vmem:[%s196 + $0x468] sm:$0xff] %v906
        %1358 = vst [vmem:[%s196 + $0x470] sm:$0xff] %v907
        %1359 = vst [vmem:[%s196 + $0x478] sm:$0xff] %v908
        %1360 = vst [vmem:[%s196 + $0x480] sm:$0xff] %v909
        %1361 = vst [vmem:[%s196 + $0x488] sm:$0xff] %v910
        %1362 = vst [vmem:[%s196 + $0x490] sm:$0xff] %v911
        %1363 = vst [vmem:[%s196 + $0x498] sm:$0xff] %v912
        %1364 = vst [vmem:[%s196 + $0x4a0] sm:$0xff] %v913
        %1365 = vst.msk [vmem:[%s196 + $0x4a8] sm:$0xff] %vm1239, %v914
        %1366 = vst [vmem:[%s196 + $0x4b0] sm:$0xff] %v915
        %1367 = vst [vmem:[%s196 + $0x4b8] sm:$0xff] %v916
        %1368 = vst [vmem:[%s196 + $0x4c0] sm:$0xff] %v917
        %1369 = vst [vmem:[%s196 + $0x4c8] sm:$0xff] %v918
        %1370 = vst [vmem:[%s196 + $0x4d0] sm:$0xff] %v919
        %1371 = vst [vmem:[%s196 + $0x4d8] sm:$0xff] %v920
        %1372 = vst [vmem:[%s196 + $0x4e0] sm:$0xff] %v921
        %1373 = vst [vmem:[%s196 + $0x4e8] sm:$0xff] %v922
        %1374 = vst [vmem:[%s196 + $0x4f0] sm:$0xff] %v923
        %1375 = vst [vmem:[%s196 + $0x4f8] sm:$0xff] %v924
        %1376 = vst [vmem:[%s196 + $0x500] sm:$0xff] %v925
        %1377 = vst [vmem:[%s196 + $0x508] sm:$0xff] %v926
        %1378 = vst [vmem:[%s196 + $0x510] sm:$0xff] %v927
        %1379 = vst [vmem:[%s196 + $0x518] sm:$0xff] %v928
        %1380 = vst [vmem:[%s196 + $0x520] sm:$0xff] %v929
        %1381 = vst [vmem:[%s196 + $0x528] sm:$0xff] %v930
        %1382 = vst [vmem:[%s196 + $0x530] sm:$0xff] %v931
        %1383 = vst [vmem:[%s196 + $0x538] sm:$0xff] %v932
        %1384 = vst [vmem:[%s196 + $0x540] sm:$0xff] %v933
        %1385 = vst [vmem:[%s196 + $0x548] sm:$0xff] %v934
        %1386 = vst [vmem:[%s196 + $0x550] sm:$0xff] %v935
        %1387 = vst [vmem:[%s196 + $0x558] sm:$0xff] %v936
        %1388 = vst [vmem:[%s196 + $0x560] sm:$0xff] %v937
        %1389 = vst [vmem:[%s196 + $0x568] sm:$0xff] %v938
        %1390 = vst.msk [vmem:[%s196 + $0x570] sm:$0xff] %vm1239, %v939
        %1391 = vst [vmem:[%s196 + $0x578] sm:$0xff] %v940
        %1392 = vst [vmem:[%s196 + $0x580] sm:$0xff] %v941
        %1393 = vst [vmem:[%s196 + $0x588] sm:$0xff] %v942
        %1394 = vst [vmem:[%s196 + $0x590] sm:$0xff] %v943
        %1395 = vst [vmem:[%s196 + $0x598] sm:$0xff] %v944
        %1396 = vst [vmem:[%s196 + $0x5a0] sm:$0xff] %v945
        %1397 = vst [vmem:[%s196 + $0x5a8] sm:$0xff] %v946
        %1398 = vst [vmem:[%s196 + $0x5b0] sm:$0xff] %v947
        %1399 = vst [vmem:[%s196 + $0x5b8] sm:$0xff] %v948
        %1400 = vst [vmem:[%s196 + $0x5c0] sm:$0xff] %v949
        %1401 = vst [vmem:[%s196 + $0x5c8] sm:$0xff] %v950
        %1402 = vst [vmem:[%s196 + $0x5d0] sm:$0xff] %v951
        %1403 = vst [vmem:[%s196 + $0x5d8] sm:$0xff] %v952
        %1404 = vst [vmem:[%s196 + $0x5e0] sm:$0xff] %v953
        %1405 = vst [vmem:[%s196 + $0x5e8] sm:$0xff] %v954
        %1406 = vst [vmem:[%s196 + $0x5f0] sm:$0xff] %v955
        %1407 = vst [vmem:[%s196 + $0x5f8] sm:$0xff] %v956
        %1408 = vst [vmem:[%s196 + $0x600] sm:$0xff] %v957
        %1409 = vst [vmem:[%s196 + $0x608] sm:$0xff] %v958
        %1410 = vst [vmem:[%s196 + $0x610] sm:$0xff] %v959
        %1411 = vst [vmem:[%s196 + $0x618] sm:$0xff] %v960
        %1412 = vst [vmem:[%s196 + $0x620] sm:$0xff] %v961
        %1413 = vst [vmem:[%s196 + $0x628] sm:$0xff] %v962
        %1414 = vst [vmem:[%s196 + $0x630] sm:$0xff] %v963
        %1415 = vst.msk [vmem:[%s196 + $0x638] sm:$0xff] %vm1239, %v964
        %1416 = vst [vmem:[%s196 + $0x640] sm:$0xff] %v965
        %1417 = vst [vmem:[%s196 + $0x648] sm:$0xff] %v966
        %1418 = vst [vmem:[%s196 + $0x650] sm:$0xff] %v967
        %1419 = vst [vmem:[%s196 + $0x658] sm:$0xff] %v968
        %1420 = vst [vmem:[%s196 + $0x660] sm:$0xff] %v969
        %1421 = vst [vmem:[%s196 + $0x668] sm:$0xff] %v970
        %1422 = vst [vmem:[%s196 + $0x670] sm:$0xff] %v971
        %1423 = vst [vmem:[%s196 + $0x678] sm:$0xff] %v972
        %1424 = vst [vmem:[%s196 + $0x680] sm:$0xff] %v973
        %1425 = vst [vmem:[%s196 + $0x688] sm:$0xff] %v974
        %1426 = vst [vmem:[%s196 + $0x690] sm:$0xff] %v975
        %1427 = vst [vmem:[%s196 + $0x698] sm:$0xff] %v976
        %1428 = vst [vmem:[%s196 + $0x6a0] sm:$0xff] %v977
        %1429 = vst [vmem:[%s196 + $0x6a8] sm:$0xff] %v978
        %1430 = vst [vmem:[%s196 + $0x6b0] sm:$0xff] %v979
        %1431 = vst [vmem:[%s196 + $0x6b8] sm:$0xff] %v980
        %1432 = vst [vmem:[%s196 + $0x6c0] sm:$0xff] %v981
        %1433 = vst [vmem:[%s196 + $0x6c8] sm:$0xff] %v982
        %1434 = vst [vmem:[%s196 + $0x6d0] sm:$0xff] %v983
        %1435 = vst [vmem:[%s196 + $0x6d8] sm:$0xff] %v984
        %1436 = vst [vmem:[%s196 + $0x6e0] sm:$0xff] %v985
        %1437 = vst [vmem:[%s196 + $0x6e8] sm:$0xff] %v986
        %1438 = vst [vmem:[%s196 + $0x6f0] sm:$0xff] %v987
        %1439 = vst [vmem:[%s196 + $0x6f8] sm:$0xff] %v988
        %1440 = vst.msk [vmem:[%s196 + $0x700] sm:$0xff] %vm1239, %v989
        %1441 = vst [vmem:[%s196 + $0x708] sm:$0xff] %v990
        %1442 = vst [vmem:[%s196 + $0x710] sm:$0xff] %v991
        %1443 = vst [vmem:[%s196 + $0x718] sm:$0xff] %v992
        %1444 = vst [vmem:[%s196 + $0x720] sm:$0xff] %v993
        %1445 = vst [vmem:[%s196 + $0x728] sm:$0xff] %v994
        %1446 = vst [vmem:[%s196 + $0x730] sm:$0xff] %v995
        %1447 = vst [vmem:[%s196 + $0x738] sm:$0xff] %v996
        %1448 = vst [vmem:[%s196 + $0x740] sm:$0xff] %v997
        %1449 = vst [vmem:[%s196 + $0x748] sm:$0xff] %v998
        %1450 = vst [vmem:[%s196 + $0x750] sm:$0xff] %v999
        %1451 = vst [vmem:[%s196 + $0x758] sm:$0xff] %v1000
        %1452 = vst [vmem:[%s196 + $0x760] sm:$0xff] %v1001
        %1453 = vst [vmem:[%s196 + $0x768] sm:$0xff] %v1002
        %1454 = vst [vmem:[%s196 + $0x770] sm:$0xff] %v1003
        %1455 = vst [vmem:[%s196 + $0x778] sm:$0xff] %v1004
        %1456 = vst [vmem:[%s196 + $0x780] sm:$0xff] %v1005
        %1457 = vst [vmem:[%s196 + $0x788] sm:$0xff] %v1006
        %1458 = vst [vmem:[%s196 + $0x790] sm:$0xff] %v1007
        %1459 = vst [vmem:[%s196 + $0x798] sm:$0xff] %v1008
        %1460 = vst [vmem:[%s196 + $0x7a0] sm:$0xff] %v1009
        %1461 = vst [vmem:[%s196 + $0x7a8] sm:$0xff] %v1010
        %1462 = vst [vmem:[%s196 + $0x7b0] sm:$0xff] %v1011
        %1463 = vst [vmem:[%s196 + $0x7b8] sm:$0xff] %v1012
        %1464 = vst [vmem:[%s196 + $0x7c0] sm:$0xff] %v1013
        %1465 = vst.msk [vmem:[%s196 + $0x7c8] sm:$0xff] %vm1239, %v1014
        %1466 = vst [vmem:[%s196 + $0x7d0] sm:$0xff] %v1015
        %1467 = vst [vmem:[%s196 + $0x7d8] sm:$0xff] %v1016
        %1468 = vst [vmem:[%s196 + $0x7e0] sm:$0xff] %v1017
        %1469 = vst [vmem:[%s196 + $0x7e8] sm:$0xff] %v1018
        %1470 = vst [vmem:[%s196 + $0x7f0] sm:$0xff] %v1019
        %1471 = vst [vmem:[%s196 + $0x7f8] sm:$0xff] %v1020
        %1472 = vst [vmem:[%s196 + $0x800] sm:$0xff] %v1021
        %1473 = vst [vmem:[%s196 + $0x808] sm:$0xff] %v1022
        %1474 = vst [vmem:[%s196 + $0x810] sm:$0xff] %v1023
        %1475 = vst [vmem:[%s196 + $0x818] sm:$0xff] %v1024
        %1476 = vst [vmem:[%s196 + $0x820] sm:$0xff] %v1025
        %1477 = vst [vmem:[%s196 + $0x828] sm:$0xff] %v1026
        %1478 = vst [vmem:[%s196 + $0x830] sm:$0xff] %v1027
        %1479 = vst [vmem:[%s196 + $0x838] sm:$0xff] %v1028
        %1480 = vst [vmem:[%s196 + $0x840] sm:$0xff] %v1029
        %1481 = vst [vmem:[%s196 + $0x848] sm:$0xff] %v1030
        %1482 = vst [vmem:[%s196 + $0x850] sm:$0xff] %v1031
        %1483 = vst [vmem:[%s196 + $0x858] sm:$0xff] %v1032
        %1484 = vst [vmem:[%s196 + $0x860] sm:$0xff] %v1033
        %1485 = vst [vmem:[%s196 + $0x868] sm:$0xff] %v1034
        %1486 = vst [vmem:[%s196 + $0x870] sm:$0xff] %v1035
        %1487 = vst [vmem:[%s196 + $0x878] sm:$0xff] %v1036
        %1488 = vst [vmem:[%s196 + $0x880] sm:$0xff] %v1037
        %1489 = vst [vmem:[%s196 + $0x888] sm:$0xff] %v1038
        %1490 = vst.msk [vmem:[%s196 + $0x890] sm:$0xff] %vm1239, %v1039
        %1491 = vst [vmem:[%s196 + $0x898] sm:$0xff] %v1040
        %1492 = vst [vmem:[%s196 + $0x8a0] sm:$0xff] %v1041
        %1493 = vst [vmem:[%s196 + $0x8a8] sm:$0xff] %v1042
        %1494 = vst [vmem:[%s196 + $0x8b0] sm:$0xff] %v1043
        %1495 = vst [vmem:[%s196 + $0x8b8] sm:$0xff] %v1044
        %1496 = vst [vmem:[%s196 + $0x8c0] sm:$0xff] %v1045
        %1497 = vst [vmem:[%s196 + $0x8c8] sm:$0xff] %v1046
        %1498 = vst [vmem:[%s196 + $0x8d0] sm:$0xff] %v1047
        %1499 = vst [vmem:[%s196 + $0x8d8] sm:$0xff] %v1048
        %1500 = vst [vmem:[%s196 + $0x8e0] sm:$0xff] %v1049
        %1501 = vst [vmem:[%s196 + $0x8e8] sm:$0xff] %v1050
        %1502 = vst [vmem:[%s196 + $0x8f0] sm:$0xff] %v1051
        %1503 = vst [vmem:[%s196 + $0x8f8] sm:$0xff] %v1052
        %1504 = vst [vmem:[%s196 + $0x900] sm:$0xff] %v1053
        %1505 = vst [vmem:[%s196 + $0x908] sm:$0xff] %v1054
        %1506 = vst [vmem:[%s196 + $0x910] sm:$0xff] %v1055
        %1507 = vst [vmem:[%s196 + $0x918] sm:$0xff] %v1056
        %1508 = vst [vmem:[%s196 + $0x920] sm:$0xff] %v1057
        %1509 = vst [vmem:[%s196 + $0x928] sm:$0xff] %v1058
        %1510 = vst [vmem:[%s196 + $0x930] sm:$0xff] %v1059
        %1511 = vst [vmem:[%s196 + $0x938] sm:$0xff] %v1060
        %1512 = vst [vmem:[%s196 + $0x940] sm:$0xff] %v1061
        %1513 = vst [vmem:[%s196 + $0x948] sm:$0xff] %v1062
        %1514 = vst [vmem:[%s196 + $0x950] sm:$0xff] %v1063
        %1515 = vst.msk [vmem:[%s196 + $0x958] sm:$0xff] %vm1239, %v1064
        %1516 = vst [vmem:[%s196 + $0x960] sm:$0xff] %v1065
        %1517 = vst [vmem:[%s196 + $0x968] sm:$0xff] %v1066
        %1518 = vst [vmem:[%s196 + $0x970] sm:$0xff] %v1067
        %1519 = vst [vmem:[%s196 + $0x978] sm:$0xff] %v1068
        %1520 = vst [vmem:[%s196 + $0x980] sm:$0xff] %v1069
        %1521 = vst [vmem:[%s196 + $0x988] sm:$0xff] %v1070
        %1522 = vst [vmem:[%s196 + $0x990] sm:$0xff] %v1071
        %1523 = vst [vmem:[%s196 + $0x998] sm:$0xff] %v1072
        %1524 = vst [vmem:[%s196 + $0x9a0] sm:$0xff] %v1073
        %1525 = vst [vmem:[%s196 + $0x9a8] sm:$0xff] %v1074
        %1526 = vst [vmem:[%s196 + $0x9b0] sm:$0xff] %v1075
        %1527 = vst [vmem:[%s196 + $0x9b8] sm:$0xff] %v1076
        %1528 = vst [vmem:[%s196 + $0x9c0] sm:$0xff] %v1077
        %1529 = vst [vmem:[%s196 + $0x9c8] sm:$0xff] %v1078
        %1530 = vst [vmem:[%s196 + $0x9d0] sm:$0xff] %v1079
        %1531 = vst [vmem:[%s196 + $0x9d8] sm:$0xff] %v1080
        %1532 = vst [vmem:[%s196 + $0x9e0] sm:$0xff] %v1081
        %1533 = vst [vmem:[%s196 + $0x9e8] sm:$0xff] %v1082
        %1534 = vst [vmem:[%s196 + $0x9f0] sm:$0xff] %v1083
        %1535 = vst [vmem:[%s196 + $0x9f8] sm:$0xff] %v1084
        %1536 = vst [vmem:[%s196 + $0xa00] sm:$0xff] %v1085
        %1537 = vst [vmem:[%s196 + $0xa08] sm:$0xff] %v1086
        %1538 = vst [vmem:[%s196 + $0xa10] sm:$0xff] %v1087
        %1539 = vst [vmem:[%s196 + $0xa18] sm:$0xff] %v1088
        %1540 = vst.msk [vmem:[%s196 + $0xa20] sm:$0xff] %vm1239, %v1089
        %1541 = vst [vmem:[%s196 + $0xa28] sm:$0xff] %v1090
        %1542 = vst [vmem:[%s196 + $0xa30] sm:$0xff] %v1091
        %1543 = vst [vmem:[%s196 + $0xa38] sm:$0xff] %v1092
        %1544 = vst [vmem:[%s196 + $0xa40] sm:$0xff] %v1093
        %1545 = vst [vmem:[%s196 + $0xa48] sm:$0xff] %v1094
        %1546 = vst [vmem:[%s196 + $0xa50] sm:$0xff] %v1095
        %1547 = vst [vmem:[%s196 + $0xa58] sm:$0xff] %v1096
        %1548 = vst [vmem:[%s196 + $0xa60] sm:$0xff] %v1097
        %1549 = vst [vmem:[%s196 + $0xa68] sm:$0xff] %v1098
        %1550 = vst [vmem:[%s196 + $0xa70] sm:$0xff] %v1099
        %1551 = vst [vmem:[%s196 + $0xa78] sm:$0xff] %v1100
        %1552 = vst [vmem:[%s196 + $0xa80] sm:$0xff] %v1101
        %1553 = vst [vmem:[%s196 + $0xa88] sm:$0xff] %v1102
        %1554 = vst [vmem:[%s196 + $0xa90] sm:$0xff] %v1103
        %1555 = vst [vmem:[%s196 + $0xa98] sm:$0xff] %v1104
        %1556 = vst [vmem:[%s196 + $0xaa0] sm:$0xff] %v1105
        %1557 = vst [vmem:[%s196 + $0xaa8] sm:$0xff] %v1106
        %1558 = vst [vmem:[%s196 + $0xab0] sm:$0xff] %v1107
        %1559 = vst [vmem:[%s196 + $0xab8] sm:$0xff] %v1108
        %1560 = vst [vmem:[%s196 + $0xac0] sm:$0xff] %v1109
        %1561 = vst [vmem:[%s196 + $0xac8] sm:$0xff] %v1110
        %1562 = vst [vmem:[%s196 + $0xad0] sm:$0xff] %v1111
        %1563 = vst [vmem:[%s196 + $0xad8] sm:$0xff] %v1112
        %1564 = vst [vmem:[%s196 + $0xae0] sm:$0xff] %v1113
        %1565 = vst.msk [vmem:[%s196 + $0xae8] sm:$0xff] %vm1239, %v1114
        %1566 = vst [vmem:[%s196 + $0xaf0] sm:$0xff] %v1115
        %1567 = vst [vmem:[%s196 + $0xaf8] sm:$0xff] %v1116
        %1568 = vst [vmem:[%s196 + $0xb00] sm:$0xff] %v1117
        %1569 = vst [vmem:[%s196 + $0xb08] sm:$0xff] %v1118
        %1570 = vst [vmem:[%s196 + $0xb10] sm:$0xff] %v1119
        %1571 = vst [vmem:[%s196 + $0xb18] sm:$0xff] %v1120
        %1572 = vst [vmem:[%s196 + $0xb20] sm:$0xff] %v1121
        %1573 = vst [vmem:[%s196 + $0xb28] sm:$0xff] %v1122
        %1574 = vst [vmem:[%s196 + $0xb30] sm:$0xff] %v1123
        %1575 = vst [vmem:[%s196 + $0xb38] sm:$0xff] %v1124
        %1576 = vst [vmem:[%s196 + $0xb40] sm:$0xff] %v1125
        %1577 = vst [vmem:[%s196 + $0xb48] sm:$0xff] %v1126
        %1578 = vst [vmem:[%s196 + $0xb50] sm:$0xff] %v1127
        %1579 = vst [vmem:[%s196 + $0xb58] sm:$0xff] %v1128
        %1580 = vst [vmem:[%s196 + $0xb60] sm:$0xff] %v1129
        %1581 = vst [vmem:[%s196 + $0xb68] sm:$0xff] %v1130
        %1582 = vst [vmem:[%s196 + $0xb70] sm:$0xff] %v1131
        %1583 = vst [vmem:[%s196 + $0xb78] sm:$0xff] %v1132
        %1584 = vst [vmem:[%s196 + $0xb80] sm:$0xff] %v1133
        %1585 = vst [vmem:[%s196 + $0xb88] sm:$0xff] %v1134
        %1586 = vst [vmem:[%s196 + $0xb90] sm:$0xff] %v1135
        %1587 = vst [vmem:[%s196 + $0xb98] sm:$0xff] %v1136
        %1588 = vst [vmem:[%s196 + $0xba0] sm:$0xff] %v1137
        %1589 = vst [vmem:[%s196 + $0xba8] sm:$0xff] %v1138
        %1590 = vst.msk [vmem:[%s196 + $0xbb0] sm:$0xff] %vm1239, %v1139
        %1591 = vst [vmem:[%s196 + $0xbb8] sm:$0xff] %v1140
        %1592 = vst [vmem:[%s196 + $0xbc0] sm:$0xff] %v1141
        %1593 = vst [vmem:[%s196 + $0xbc8] sm:$0xff] %v1142
        %1594 = vst [vmem:[%s196 + $0xbd0] sm:$0xff] %v1143
        %1595 = vst [vmem:[%s196 + $0xbd8] sm:$0xff] %v1144
        %1596 = vst [vmem:[%s196 + $0xbe0] sm:$0xff] %v1145
        %1597 = vst [vmem:[%s196 + $0xbe8] sm:$0xff] %v1146
        %1598 = vst [vmem:[%s196 + $0xbf0] sm:$0xff] %v1147
        %1599 = vst [vmem:[%s196 + $0xbf8] sm:$0xff] %v1148
        %1600 = vst [vmem:[%s196 + $0xc00] sm:$0xff] %v1149
        %1601 = vst [vmem:[%s196 + $0xc08] sm:$0xff] %v1150
        %1602 = vst [vmem:[%s196 + $0xc10] sm:$0xff] %v1151
        %1603 = vst [vmem:[%s196 + $0xc18] sm:$0xff] %v1152
        %1604 = vst [vmem:[%s196 + $0xc20] sm:$0xff] %v1153
        %1605 = vst [vmem:[%s196 + $0xc28] sm:$0xff] %v1154
        %1606 = vst [vmem:[%s196 + $0xc30] sm:$0xff] %v1155
        %1607 = vst [vmem:[%s196 + $0xc38] sm:$0xff] %v1156
        %1608 = vst [vmem:[%s196 + $0xc40] sm:$0xff] %v1157
        %1609 = vst [vmem:[%s196 + $0xc48] sm:$0xff] %v1158
        %1610 = vst [vmem:[%s196 + $0xc50] sm:$0xff] %v1159
        %1611 = vst [vmem:[%s196 + $0xc58] sm:$0xff] %v1160
        %1612 = vst [vmem:[%s196 + $0xc60] sm:$0xff] %v1161
        %1613 = vst [vmem:[%s196 + $0xc68] sm:$0xff] %v1162
        %1614 = vst [vmem:[%s196 + $0xc70] sm:$0xff] %v1163
        %1615 = vst.msk [vmem:[%s196 + $0xc78] sm:$0xff] %vm1239, %v1164
        %1616 = vst [vmem:[%s196 + $0xc80] sm:$0xff] %v1165
        %1617 = vst [vmem:[%s196 + $0xc88] sm:$0xff] %v1166
        %1618 = vst [vmem:[%s196 + $0xc90] sm:$0xff] %v1167
        %1619 = vst [vmem:[%s196 + $0xc98] sm:$0xff] %v1168
        %1620 = vst [vmem:[%s196 + $0xca0] sm:$0xff] %v1169
        %1621 = vst [vmem:[%s196 + $0xca8] sm:$0xff] %v1170
        %1622 = vst [vmem:[%s196 + $0xcb0] sm:$0xff] %v1171
        %1623 = vst [vmem:[%s196 + $0xcb8] sm:$0xff] %v1172
        %1624 = vst [vmem:[%s196 + $0xcc0] sm:$0xff] %v1173
        %1625 = vst [vmem:[%s196 + $0xcc8] sm:$0xff] %v1174
        %1626 = vst [vmem:[%s196 + $0xcd0] sm:$0xff] %v1175
        %1627 = vst [vmem:[%s196 + $0xcd8] sm:$0xff] %v1176
        %1628 = vst [vmem:[%s196 + $0xce0] sm:$0xff] %v1177
        %1629 = vst [vmem:[%s196 + $0xce8] sm:$0xff] %v1178
        %1630 = vst [vmem:[%s196 + $0xcf0] sm:$0xff] %v1179
        %1631 = vst [vmem:[%s196 + $0xcf8] sm:$0xff] %v1180
        %1632 = vst [vmem:[%s196 + $0xd00] sm:$0xff] %v1181
        %1633 = vst [vmem:[%s196 + $0xd08] sm:$0xff] %v1182
        %1634 = vst [vmem:[%s196 + $0xd10] sm:$0xff] %v1183
        %1635 = vst [vmem:[%s196 + $0xd18] sm:$0xff] %v1184
        %1636 = vst [vmem:[%s196 + $0xd20] sm:$0xff] %v1185
        %1637 = vst [vmem:[%s196 + $0xd28] sm:$0xff] %v1186
        %1638 = vst [vmem:[%s196 + $0xd30] sm:$0xff] %v1187
        %1639 = vst [vmem:[%s196 + $0xd38] sm:$0xff] %v1188
        %1640 = vst.msk [vmem:[%s196 + $0xd40] sm:$0xff] %vm1239, %v1189
        %1641 = vst [vmem:[%s196 + $0xd48] sm:$0xff] %v1190
        %1642 = vst [vmem:[%s196 + $0xd50] sm:$0xff] %v1191
        %1643 = vst [vmem:[%s196 + $0xd58] sm:$0xff] %v1192
        %1644 = vst [vmem:[%s196 + $0xd60] sm:$0xff] %v1193
        %1645 = vst [vmem:[%s196 + $0xd68] sm:$0xff] %v1194
        %1646 = vst [vmem:[%s196 + $0xd70] sm:$0xff] %v1195
        %1647 = vst [vmem:[%s196 + $0xd78] sm:$0xff] %v1196
        %1648 = vst [vmem:[%s196 + $0xd80] sm:$0xff] %v1197
        %1649 = vst [vmem:[%s196 + $0xd88] sm:$0xff] %v1198
        %1650 = vst [vmem:[%s196 + $0xd90] sm:$0xff] %v1199
        %1651 = vst [vmem:[%s196 + $0xd98] sm:$0xff] %v1200
        %1652 = vst [vmem:[%s196 + $0xda0] sm:$0xff] %v1201
        %1653 = vst [vmem:[%s196 + $0xda8] sm:$0xff] %v1202
        %1654 = vst [vmem:[%s196 + $0xdb0] sm:$0xff] %v1203
        %1655 = vst [vmem:[%s196 + $0xdb8] sm:$0xff] %v1204
        %1656 = vst [vmem:[%s196 + $0xdc0] sm:$0xff] %v1205
        %1657 = vst [vmem:[%s196 + $0xdc8] sm:$0xff] %v1206
        %1658 = vst [vmem:[%s196 + $0xdd0] sm:$0xff] %v1207
        %1659 = vst [vmem:[%s196 + $0xdd8] sm:$0xff] %v1208
        %1660 = vst [vmem:[%s196 + $0xde0] sm:$0xff] %v1209
        %1661 = vst [vmem:[%s196 + $0xde8] sm:$0xff] %v1210
        %1662 = vst [vmem:[%s196 + $0xdf0] sm:$0xff] %v1211
        %1663 = vst [vmem:[%s196 + $0xdf8] sm:$0xff] %v1212
        %1664 = vst [vmem:[%s196 + $0xe00] sm:$0xff] %v1213
        %1665 = vst.msk [vmem:[%s196 + $0xe08] sm:$0xff] %vm1239, %v1214
        %s1666 = sand.u32 %s95, 1
        %s1667 = scalar_lea.sflag [#allocation4], %s1666
        %s1668 = sand.u32 %s95, 1
        %s1669 = smul.addr %s1668, 3600
        %s1670 = scalar_lea.vmem [#allocation5], %s1669
        // Predicated region
        $region33: #{tpu_custom_call.1} parent=27 // pred_check
          %p1671 = pneg %p105
        $region34: #{tpu_custom_call.1} parent=27 // pred_check_branch
          %1673 = sbr.rel (%p1671) target = $region36
        $region35: #{tpu_custom_call.1} parent=27 // pred_region
          %s1674 = smul.u32 18, %s23
          %s1675 = smul.u32 25, %s24
          %s1677 = ssub.s32 57600, 57600
          %1678 = vsyncadd %s1667, %s1677
          %s1679 = smul.addr %s1674, 25
          %s1680 = sadd.s32 %s1675, %s1679
          %s1681 = smul.addr %s1680, 128
          %s1682 = scalar_lea.hbm %s2, %s1681
          %s1683 = sshll.u32 %s1670, 4
          %s1684 = int_to_ptr.vmem [resolvable:$true] %s1683
          %1689 = dma.vmem_to_hbm [thread:$0]  %s1684, 57600, %s1682, %s1667, 3200, 3200, 200
        $region36: #{tpu_custom_call.1} parent=27 // pred_fallthru
          _
      $region28: #{tpu_custom_call.1} parent=5 // pred_fallthru
        _
      %p1690 = scmp.le.s32.totalorder 2, %s14
      // Predicated region
      $region37: #{tpu_custom_call.1} parent=5 // pred_check
        %p1691 = pneg %p1690
      $region38: #{tpu_custom_call.1} parent=5 // pred_check_branch
        %1693 = sbr.rel (%p1691) target = $region40
      $region39: #{tpu_custom_call.1} parent=5 // pred_region
        %s1694 = ssub.s32 %s14, 2
        // Predicated region
        $region41: #{tpu_custom_call.1} parent=39 // pred_check
          %p1695 = pneg %p111
        $region42: #{tpu_custom_call.1} parent=39 // pred_check_branch
          %1697 = sbr.rel (%p1695) target = $region44
        $region43: #{tpu_custom_call.1} parent=39 // pred_region
          %s1698 = sand.u32 %s96, 1
          %s1699 = scalar_lea.sflag [#allocation4], %s1698
          %s1700 = sand.u32 %s96, 1
          %s1701 = smul.addr %s1700, 3600
          %s1702 = scalar_lea.vmem [#allocation5], %s1701
          %1703 = dma.done %s1699, 57600
        $region44: #{tpu_custom_call.1} parent=39 // pred_fallthru
          _
      $region40: #{tpu_custom_call.1} parent=5 // pred_fallthru
        _
    $region6: #{tpu_custom_call.1} parent=1 // loop_footer
      %s18 = sadd.s32 1, %s14
    $region7: #{tpu_custom_call.1} parent=1 // loop_footer_branch
      %13 = sbr.rel target = $region3
    $region8: #{tpu_custom_call.1} parent=1 // loop_exit
      _
    %1704 = vsyncpa [#allocation3], 1
    %s1705 = scalar_lea.sflag [#allocation3], 1
    %1706 = vsyncpa %s1705, 1
    %1707 = vsyncpa [#allocation4], 1
    %s1708 = scalar_lea.sflag [#allocation4], 1
    %1709 = vsyncpa %s1708, 1

</llo_original>
